<compile_context>
chip_gen: v6e
topology: v6e:2x2x1
jax: 0.10.0
libtpu: 0.0.40
codegen_flags: <defaults>
</compile_context>

<pallas_src>
import functools

import jax
import jax.numpy as jnp
from jax.experimental import pallas as pl
from jax.experimental.pallas import tpu as pltpu

LANE = 128       # TPU lane width: channel / class dims are zero-padded to this.
BN_EPS = 1e-5


# --------------------------------------------------------------------------- #
# Kernel 1: stem conv 7x7 / stride 2 as ONE bf16 MXU matmul per batch block
#           (+ per-block BatchNorm partial sums)
# --------------------------------------------------------------------------- #
def _stem_conv_kernel(g_ref, w_ref, y_ref, s_ref, ss_ref, *, bblk, m_rows, kpad):
    """
    g_ref  : (B, 2, M, KPAD) bf16  space-to-depth input; all 4 height taps folded into
                                   the contraction dim, output-column parity on dim 1
    w_ref  : (KPAD, LANE)    bf16  folded 7x7 weights, Cout zero-padded to 128 lanes
    y_ref  : (B, 2, M, LANE) bf16  conv output, flat sublane/lane-dense slabs
    s_ref  : (1, 1, LANE)    f32   per-block channel sum        (for BN)
    ss_ref : (1, 1, LANE)    f32   per-block channel sum-of-sq  (for BN)
    """
    lhs = g_ref[...].reshape(bblk * 2 * m_rows, kpad)      # leading-dim merge (free)
    acc = jnp.dot(lhs, w_ref[...], preferred_element_type=jnp.float32)
    y_ref[...] = acc.reshape(bblk, 2, m_rows, LANE).astype(y_ref.dtype)
    # TODO(synk): E[x^2]-E[x]^2 can cancel for large activation means; fine at this scale.
    s_ref[0] = jnp.sum(acc, axis=0, keepdims=True)
    ss_ref[0] = jnp.sum(acc * acc, axis=0, keepdims=True)


# --------------------------------------------------------------------------- #
# Kernel 2: BN apply -> ReLU -> MaxPool(3, s2, p1) -> GAP -> Linear  (fused)
# --------------------------------------------------------------------------- #
def _head_kernel(y_ref, sc_ref, sh_ref, fw_ref, fb_ref, o_ref, *, bblk, ph, pw):
    """
    y_ref  : (B, 2, OH*PW, LANE) bf16  conv output (dim 1 = output-column parity)
    sc_ref, sh_ref : (1, LANE)   f32   precomputed BN scale / shift
    fw_ref : (LANE, LANE) bf16 ; fb_ref : (1, LANE) f32
    o_ref  : (1, B, LANE) f32          logits (classes zero-padded to LANE)
    """
    scale = sc_ref[...].reshape(1, 1, 1, LANE)
    shift = sh_ref[...].reshape(1, 1, 1, LANE)

    # BN + ReLU in f32 (bf16 only feeds the MXU).  ReLU before the max pool is
    # equivalent (max is monotone) and makes the zero pool padding neutral.
    v = jnp.maximum(y_ref[...].astype(jnp.float32) * scale + shift, 0.0)

    # 3x3 / stride-2 / pad-1 max pool as elementwise maxima of shifted planes
    # (VPU work only; no windowed reductions).  conv row i = 2*pr + s.
    v6 = v.reshape(bblk, 2, ph, 2, pw, LANE)
    even_r = v6[:, :, :, 0]                               # rows 2*pr   (B,2,PH,PW,L)
    odd_r = v6[:, :, :, 1]                                # rows 2*pr + 1
    odd_up = jnp.concatenate(                             # rows 2*pr - 1 (0 at pr=0)
        [jnp.zeros_like(odd_r[:, :, :1]), odd_r[:, :, :-1]], axis=2)
    rowmax = jnp.maximum(jnp.maximum(even_r, odd_r), odd_up)

    col_even = rowmax[:, 0]                               # conv cols 2*pc   (B,PH,PW,L)
    col_odd = rowmax[:, 1]                                # conv cols 2*pc + 1
    col_odd_l = jnp.concatenate(                          # conv cols 2*pc - 1 (0 at pc=0)
        [jnp.zeros_like(col_odd[:, :, :1]), col_odd[:, :, :-1]], axis=2)
    pooled = jnp.maximum(jnp.maximum(col_even, col_odd), col_odd_l)

    # Global average pool + classifier, everything still resident in VMEM.
    gap = jnp.sum(pooled.reshape(bblk, ph * pw, LANE), axis=1) * (1.0 / (ph * pw))
    logits = jnp.dot(gap.astype(jnp.bfloat16), fw_ref[...],
                     preferred_element_type=jnp.float32) + fb_ref[...]
    o_ref[0] = logits


# --------------------------------------------------------------------------- #
# Host-side layout prep (plain JAX, cheap reorders only)
# --------------------------------------------------------------------------- #
def _prep_conv_inputs(x_nchw, conv_w):
    """NCHW->NHWC, pad, fold the stride-2 phases and all 7x7 taps into one deep
    contraction dim (K = 64*Cin, lane-padded), split conv output columns by parity,
    cast the LHS to bf16.  Output rows are flattened so K1/K2 see dense 128-wide slabs."""
    n, cin, h, w = x_nchw.shape
    cout = conv_w.shape[0]
    assert h % 4 == 0 and w % 4 == 0, "H and W must be multiples of 4"
    assert cout <= LANE
    oh, ow = h // 2, w // 2
    pw = ow // 2
    kfold = 64 * cin                                     # 4a * 4b * 2p * 2q * cin
    kpad = ((kfold + LANE - 1) // LANE) * LANE           # lane-aligned contraction

    x = jnp.transpose(x_nchw, (0, 2, 3, 1)).astype(jnp.float32)    # NHWC
    xp = jnp.pad(x, ((0, 0), (3, 3), (3, 3), (0, 0)))               # conv pad = 3

    # G[n, i, j, idx(a,b,p,q,c)] = xp[n, 2i + 2a + p, 2j + 2b + q, c]
    chunks = []
    for a in range(4):
        for b in range(4):
            for p in range(2):
                for q in range(2):
                    chunks.append(xp[:, 2 * a + p: 2 * a + p + 2 * oh: 2,
                                     2 * b + q: 2 * b + q + 2 * ow: 2, :])
    g = jnp.concatenate(chunks, axis=-1)                            # (N, OH, OW, KFOLD)
    # Split conv output columns by parity (j = 2*pc + f), flatten rows, pad K, bf16.
    g = (g.reshape(n, oh, pw, 2, kfold)
           .transpose(0, 3, 1, 2, 4)                                # (N, 2, OH, PW, K)
           .reshape(n, 2, oh * pw, kfold))
    g = jnp.pad(g, ((0, 0), (0, 0), (0, 0), (0, kpad - kfold))).astype(jnp.bfloat16)

    # Weights: (Cout, Cin, 7, 7) -> one folded (KPAD, LANE) slab, bf16, lane-dense.
    rows = []
    for a in range(4):
        for b in range(4):
            for p in range(2):
                for q in range(2):
                    di, dj = 2 * a + p, 2 * b + q
                    if di < 7 and dj < 7:
                        rows.append(jnp.transpose(conv_w[:, :, di, dj]))   # (Cin, Cout)
                    else:
                        rows.append(jnp.zeros((cin, cout), conv_w.dtype))
    w3 = jnp.concatenate(rows, axis=0)                              # (KFOLD, Cout)
    w3 = jnp.pad(w3, ((0, kpad - kfold), (0, LANE - cout))).astype(jnp.bfloat16)
    return g, w3, oh, ow, pw, kpad


def _pick_block(n, max_b=8):
    """Largest divisor of n that is <= max_b (samples per grid step)."""
    b = min(n, max_b)
    while n % b:
        b -= 1
    return b


# --------------------------------------------------------------------------- #
# Forward
# --------------------------------------------------------------------------- #
def resnet_forward(x_nchw, params):
    conv_w = params["conv_w"]
    n = x_nchw.shape[0]
    cout = conv_w.shape[0]
    ydim = params["fc_w"].shape[1]
    assert ydim <= LANE

    g, w3, oh, ow, pw, kpad = _prep_conv_inputs(x_nchw, conv_w)
    m_rows = oh * pw
    ph = oh // 2
    bblk = _pick_block(n)
    nblk = n // bblk

    # ---- kernel 1: stem conv (one big bf16 MXU dot per block) + BN partial sums ----
    y, s, ss = pl.pallas_call(
        functools.partial(_stem_conv_kernel, bblk=bblk, m_rows=m_rows, kpad=kpad),
        out_shape=(
            jax.ShapeDtypeStruct((n, 2, m_rows, LANE), jnp.bfloat16),
            jax.ShapeDtypeStruct((nblk, 1, LANE), jnp.float32),
            jax.ShapeDtypeStruct((nblk, 1, LANE), jnp.float32),
        ),
        grid=(nblk,),
        in_specs=[
            pl.BlockSpec((bblk, 2, m_rows, kpad), lambda i: (i, 0, 0, 0)),
            pl.BlockSpec((kpad, LANE), lambda i: (0, 0)),
        ],
        out_specs=(
            pl.BlockSpec((bblk, 2, m_rows, LANE), lambda i: (i, 0, 0, 0)),
            pl.BlockSpec((1, 1, LANE), lambda i: (i, 0, 0)),
            pl.BlockSpec((1, 1, LANE), lambda i: (i, 0, 0)),
        ),
        compiler_params=pltpu.CompilerParams(dimension_semantics=("parallel",)),
    )(g, w3)

    # ---- training-mode BatchNorm scale/shift, computed ONCE on tiny (nblk,128) sums --
    count = jnp.float32(n * oh * ow)
    mean = jnp.sum(s[:, 0, :], axis=0) / count                      # (LANE,)
    ex2 = jnp.sum(ss[:, 0, :], axis=0) / count
    gamma = jnp.pad(params["bn_gamma"].astype(jnp.float32), (0, LANE - cout))
    beta = jnp.pad(params["bn_beta"].astype(jnp.float32), (0, LANE - cout))
    inv_std = jax.lax.rsqrt(ex2 - mean * mean + BN_EPS)
    scale = (gamma * inv_std)[None, :]                              # (1, LANE)
    shift = (beta - mean * gamma * inv_std)[None, :]                # (1, LANE)

    # Lane-padded classifier parameters (padded channels / classes stay exactly 0).
    fw = jnp.pad(params["fc_w"].astype(jnp.float32),
                 ((0, LANE - cout), (0, LANE - ydim))).astype(jnp.bfloat16)
    fb = jnp.pad(params["fc_b"].astype(jnp.float32)[None, :], ((0, 0), (0, LANE - ydim)))

    # ---- kernel 2: BN apply + ReLU + maxpool + GAP + Linear, fully fused ------------
    out = pl.pallas_call(
        functools.partial(_head_kernel, bblk=bblk, ph=ph, pw=pw),
        out_shape=jax.ShapeDtypeStruct((nblk, bblk, LANE), jnp.float32),
        grid=(nblk,),
        in_specs=[
            pl.BlockSpec((bblk, 2, m_rows, LANE), lambda i: (i, 0, 0, 0)),
            pl.BlockSpec((1, LANE), lambda i: (0, 0)),
            pl.BlockSpec((1, LANE), lambda i: (0, 0)),
            pl.BlockSpec((LANE, LANE), lambda i: (0, 0)),
            pl.BlockSpec((1, LANE), lambda i: (0, 0)),
        ],
        out_specs=pl.BlockSpec((1, bblk, LANE), lambda i: (i, 0, 0)),
        compiler_params=pltpu.CompilerParams(dimension_semantics=("parallel",)),
    )(y, scale, shift, fw, fb)

    return out.reshape(n, LANE)[:, :ydim]


# --------------------------------------------------------------------------- #
# Parameter init matching the PyTorch module's init_parameters()
# --------------------------------------------------------------------------- #
def init_params(key, inch=8, ydim=10):
    k1, k2, k3 = jax.random.split(key, 3)
    # kaiming_normal_(mode='fan_out', nonlinearity='relu'): std = sqrt(2 / (Cout*kh*kw))
    fan_out = inch * 7 * 7
    conv_w = jax.random.normal(k1, (inch, 3, 7, 7), jnp.float32) * jnp.sqrt(2.0 / fan_out)
    bn_gamma = jnp.ones((inch,), jnp.float32)
    bn_beta = jnp.zeros((inch,), jnp.float32)
    # nn.Linear default init (uniform +/- 1/sqrt(fan_in)); weight stored pre-transposed
    bound = 1.0 / jnp.sqrt(jnp.float32(inch))
    fc_w = jax.random.uniform(k2, (inch, ydim), jnp.float32, -bound, bound)
    fc_b = jax.random.uniform(k3, (ydim,), jnp.float32, -bound, bound)
    return dict(conv_w=conv_w, bn_gamma=bn_gamma, bn_beta=bn_beta,
                fc_w=fc_w, fc_b=fc_b)


if __name__ == "__main__":
    key = jax.random.PRNGKey(0)
    kx, kp = jax.random.split(key)
    x = jax.random.normal(kx, (2, 3, 32, 32), jnp.float32)   # NCHW, like PyTorch input
    params = init_params(kp, inch=8, ydim=10)

    fwd = jax.jit(lambda inp: resnet_forward(inp, params))
    out = fwd(x)
    jax.block_until_ready(out)
    assert out.shape == (2, 10) and out.dtype == jnp.float32
    assert bool(jnp.all(jnp.isfinite(out)))
    print("KERNEL_OK")
</pallas_src>

<mosaic_0001>
module attributes {stable_mosaic.version = 11 : i64} {
  func.func @_stem_conv_kernel(%arg0: i32, %arg1: memref<2x2x128x256xbf16, #tpu.memory_space<vmem>>, %arg2: memref<256x128xbf16, #tpu.memory_space<vmem>>, %arg3: memref<2x2x128x128xbf16, #tpu.memory_space<vmem>>, %arg4: memref<1x1x128xf32, #tpu.memory_space<vmem>>, %arg5: memref<1x1x128xf32, #tpu.memory_space<vmem>>) attributes {dimension_semantics = [#tpu.dimension_semantics<parallel>], iteration_bounds = array<i64: 1>, scalar_prefetch = 0 : i64, scratch_operands = 0 : i64, tpu.core_type = #tpu.core_type<tc>, window_params = [{transform_indices = @transform_0, window_bounds = array<i64: 2, 2, 128, 256>}, {pipeline_mode = #tpu.pipeline_mode<synchronous>, transform_indices = @transform_1, window_bounds = array<i64: 256, 128>}, {transform_indices = @transform_2, window_bounds = array<i64: 2, 2, 128, 128>}, {transform_indices = @transform_3, window_bounds = array<i64: 1, 1, 128>}, {transform_indices = @transform_4, window_bounds = array<i64: 1, 1, 128>}]} {
    %c0 = arith.constant 0 : index
    %c0_0 = arith.constant 0 : index
    %c0_1 = arith.constant 0 : index
    %c0_2 = arith.constant 0 : index
    %0 = vector.load %arg1[%c0, %c0_0, %c0_1, %c0_2] : memref<2x2x128x256xbf16, #tpu.memory_space<vmem>>, vector<2x2x128x256xbf16>
    %1 = vector.shape_cast %0 : vector<2x2x128x256xbf16> to vector<512x256xbf16>
    %c0_3 = arith.constant 0 : index
    %c0_4 = arith.constant 0 : index
    %2 = vector.load %arg2[%c0_3, %c0_4] : memref<256x128xbf16, #tpu.memory_space<vmem>>, vector<256x128xbf16>
    %cst = arith.constant dense<0.000000e+00> : vector<512x128xf32>
    %3 = tpu.matmul %1, %2, %cst {dimension_numbers = #tpu.dot_dimension_numbers<[1], [0], [0], [1], [0, 0, 1, 1], [], []>} : vector<512x256xbf16>, vector<256x128xbf16>, vector<512x128xf32> -> vector<512x128xf32>
    %4 = vector.shape_cast %3 : vector<512x128xf32> to vector<2x2x128x128xf32>
    %5 = arith.truncf %4 : vector<2x2x128x128xf32> to vector<2x2x128x128xbf16>
    %c0_5 = arith.constant 0 : index
    %c0_6 = arith.constant 0 : index
    %c0_7 = arith.constant 0 : index
    %c0_8 = arith.constant 0 : index
    %6 = vector.load %arg3[%c0_5, %c0_6, %c0_7, %c0_8] : memref<2x2x128x128xbf16, #tpu.memory_space<vmem>>, vector<2x2x128x128xbf16>
    tpu.vector_store %arg3[%c0_5, %c0_6, %c0_7, %c0_8], %5 {strides = array<i32>} : memref<2x2x128x128xbf16, #tpu.memory_space<vmem>>, vector<2x2x128x128xbf16>,
    %cst_9 = arith.constant dense<0.000000e+00> : vector<128xf32>
    %7 = vector.multi_reduction <add>, %3, %cst_9 [0] : vector<512x128xf32> to vector<128xf32>
    %8 = vector.shape_cast %7 : vector<128xf32> to vector<1x128xf32>
    %c0_10 = arith.constant 0 : index
    %c0_11 = arith.constant 0 : index
    %c0_12 = arith.constant 0 : index
    %9 = vector.load %arg4[%c0_10, %c0_11, %c0_12] : memref<1x1x128xf32, #tpu.memory_space<vmem>>, vector<1x1x128xf32>
    %10 = vector.shape_cast %9 : vector<1x1x128xf32> to vector<1x128xf32>
    %11 = vector.shape_cast %8 : vector<1x128xf32> to vector<1x1x128xf32>
    tpu.vector_store %arg4[%c0_10, %c0_11, %c0_12], %11 {strides = array<i32>} : memref<1x1x128xf32, #tpu.memory_space<vmem>>, vector<1x1x128xf32>,
    %12 = arith.mulf %3, %3 : vector<512x128xf32>
    %cst_13 = arith.constant dense<0.000000e+00> : vector<128xf32>
    %13 = vector.multi_reduction <add>, %12, %cst_13 [0] : vector<512x128xf32> to vector<128xf32>
    %14 = vector.shape_cast %13 : vector<128xf32> to vector<1x128xf32>
    %c0_14 = arith.constant 0 : index
    %c0_15 = arith.constant 0 : index
    %c0_16 = arith.constant 0 : index
    %15 = vector.load %arg5[%c0_14, %c0_15, %c0_16] : memref<1x1x128xf32, #tpu.memory_space<vmem>>, vector<1x1x128xf32>
    %16 = vector.shape_cast %15 : vector<1x1x128xf32> to vector<1x128xf32>
    %17 = vector.shape_cast %14 : vector<1x128xf32> to vector<1x1x128xf32>
    tpu.vector_store %arg5[%c0_14, %c0_15, %c0_16], %17 {strides = array<i32>} : memref<1x1x128xf32, #tpu.memory_space<vmem>>, vector<1x1x128xf32>,
    return
  }
  func.func @transform_0(%arg0: i32) -> (i32, i32, i32, i32) {
    %c0_i32 = arith.constant 0 : i32
    %c0_i32_0 = arith.constant 0 : i32
    %c0_i32_1 = arith.constant 0 : i32
    %c0_i32_2 = arith.constant 0 : i32
    return %arg0, %c0_i32, %c0_i32_0, %c0_i32_1 : i32, i32, i32, i32
  }
  func.func @transform_1(%arg0: i32) -> (i32, i32) {
    %c0_i32 = arith.constant 0 : i32
    %c0_i32_0 = arith.constant 0 : i32
    %c0_i32_1 = arith.constant 0 : i32
    return %c0_i32, %c0_i32_0 : i32, i32
  }
  func.func @transform_2(%arg0: i32) -> (i32, i32, i32, i32) {
    %c0_i32 = arith.constant 0 : i32
    %c0_i32_0 = arith.constant 0 : i32
    %c0_i32_1 = arith.constant 0 : i32
    %c0_i32_2 = arith.constant 0 : i32
    return %arg0, %c0_i32, %c0_i32_0, %c0_i32_1 : i32, i32, i32, i32
  }
  func.func @transform_3(%arg0: i32) -> (i32, i32, i32) {
    %c0_i32 = arith.constant 0 : i32
    %c0_i32_0 = arith.constant 0 : i32
    %c0_i32_1 = arith.constant 0 : i32
    return %arg0, %c0_i32, %c0_i32_0 : i32, i32, i32
  }
  func.func @transform_4(%arg0: i32) -> (i32, i32, i32) {
    %c0_i32 = arith.constant 0 : i32
    %c0_i32_0 = arith.constant 0 : i32
    %c0_i32_1 = arith.constant 0 : i32
    return %arg0, %c0_i32, %c0_i32_0 : i32, i32, i32
  }
}

module attributes {stable_mosaic.version = 11 : i64} {
  func.func @_head_kernel(%arg0: i32, %arg1: memref<2x2x128x128xbf16, #tpu.memory_space<vmem>>, %arg2: memref<1x128xf32, #tpu.memory_space<vmem>>, %arg3: memref<1x128xf32, #tpu.memory_space<vmem>>, %arg4: memref<128x128xbf16, #tpu.memory_space<vmem>>, %arg5: memref<1x128xf32, #tpu.memory_space<vmem>>, %arg6: memref<1x2x128xf32, #tpu.memory_space<vmem>>) attributes {dimension_semantics = [#tpu.dimension_semantics<parallel>], iteration_bounds = array<i64: 1>, scalar_prefetch = 0 : i64, scratch_operands = 0 : i64, tpu.core_type = #tpu.core_type<tc>, window_params = [{transform_indices = @transform_0, window_bounds = array<i64: 2, 2, 128, 128>}, {pipeline_mode = #tpu.pipeline_mode<synchronous>, transform_indices = @transform_1, window_bounds = array<i64: 1, 128>}, {pipeline_mode = #tpu.pipeline_mode<synchronous>, transform_indices = @transform_2, window_bounds = array<i64: 1, 128>}, {pipeline_mode = #tpu.pipeline_mode<synchronous>, transform_indices = @transform_3, window_bounds = array<i64: 128, 128>}, {pipeline_mode = #tpu.pipeline_mode<synchronous>, transform_indices = @transform_4, window_bounds = array<i64: 1, 128>}, {transform_indices = @transform_5, window_bounds = array<i64: 1, 2, 128>}]} {
    %c0 = arith.constant 0 : index
    %c0_0 = arith.constant 0 : index
    %0 = vector.load %arg2[%c0, %c0_0] : memref<1x128xf32, #tpu.memory_space<vmem>>, vector<1x128xf32>
    %1 = vector.shape_cast %0 : vector<1x128xf32> to vector<1x1x1x128xf32>
    %c0_1 = arith.constant 0 : index
    %c0_2 = arith.constant 0 : index
    %2 = vector.load %arg3[%c0_1, %c0_2] : memref<1x128xf32, #tpu.memory_space<vmem>>, vector<1x128xf32>
    %3 = vector.shape_cast %2 : vector<1x128xf32> to vector<1x1x1x128xf32>
    %c0_3 = arith.constant 0 : index
    %c0_4 = arith.constant 0 : index
    %c0_5 = arith.constant 0 : index
    %c0_6 = arith.constant 0 : index
    %4 = vector.load %arg1[%c0_3, %c0_4, %c0_5, %c0_6] : memref<2x2x128x128xbf16, #tpu.memory_space<vmem>>, vector<2x2x128x128xbf16>
    %5 = arith.extf %4 : vector<2x2x128x128xbf16> to vector<2x2x128x128xf32>
    %6 = vector.broadcast %1 : vector<1x1x1x128xf32> to vector<2x2x128x128xf32>
    %7 = arith.mulf %5, %6 : vector<2x2x128x128xf32>
    %8 = vector.broadcast %3 : vector<1x1x1x128xf32> to vector<2x2x128x128xf32>
    %9 = arith.addf %7, %8 : vector<2x2x128x128xf32>
    %cst = arith.constant 0.000000e+00 : f32
    %10 = vector.broadcast %cst : f32 to vector<2x2x128x128xf32>
    %11 = arith.maximumf %9, %10 : vector<2x2x128x128xf32>
    %12 = vector.shape_cast %11 : vector<2x2x128x128xf32> to vector<2x2x8x2x8x128xf32>
    %13 = vector.extract_strided_slice %12 {offsets = [0, 0, 0, 0, 0, 0], sizes = [2, 2, 8, 1, 8, 128], strides = [1, 1, 1, 1, 1, 1]} : vector<2x2x8x2x8x128xf32> to vector<2x2x8x1x8x128xf32>
    %14 = vector.shape_cast %13 : vector<2x2x8x1x8x128xf32> to vector<2x2x8x8x128xf32>
    %15 = vector.extract_strided_slice %12 {offsets = [0, 0, 0, 1, 0, 0], sizes = [2, 2, 8, 1, 8, 128], strides = [1, 1, 1, 1, 1, 1]} : vector<2x2x8x2x8x128xf32> to vector<2x2x8x1x8x128xf32>
    %16 = vector.shape_cast %15 : vector<2x2x8x1x8x128xf32> to vector<2x2x8x8x128xf32>
    %cst_7 = arith.constant 0.000000e+00 : f32
    %17 = vector.broadcast %cst_7 : f32 to vector<2x2x1x8x128xf32>
    %18 = vector.extract_strided_slice %16 {offsets = [0, 0, 0, 0, 0], sizes = [2, 2, 7, 8, 128], strides = [1, 1, 1, 1, 1]} : vector<2x2x8x8x128xf32> to vector<2x2x7x8x128xf32>
    %19 = tpu.concatenate %17, %18 in 2 : vector<2x2x1x8x128xf32>, vector<2x2x7x8x128xf32> -> vector<2x2x8x8x128xf32>
    %20 = arith.maximumf %14, %16 : vector<2x2x8x8x128xf32>
    %21 = arith.maximumf %20, %19 : vector<2x2x8x8x128xf32>
    %22 = vector.extract_strided_slice %21 {offsets = [0, 0, 0, 0, 0], sizes = [2, 1, 8, 8, 128], strides = [1, 1, 1, 1, 1]} : vector<2x2x8x8x128xf32> to vector<2x1x8x8x128xf32>
    %23 = vector.shape_cast %22 : vector<2x1x8x8x128xf32> to vector<2x8x8x128xf32>
    %24 = vector.extract_strided_slice %21 {offsets = [0, 1, 0, 0, 0], sizes = [2, 1, 8, 8, 128], strides = [1, 1, 1, 1, 1]} : vector<2x2x8x8x128xf32> to vector<2x1x8x8x128xf32>
    %25 = vector.shape_cast %24 : vector<2x1x8x8x128xf32> to vector<2x8x8x128xf32>
    %cst_8 = arith.constant 0.000000e+00 : f32
    %26 = vector.broadcast %cst_8 : f32 to vector<2x8x1x128xf32>
    %27 = vector.extract_strided_slice %25 {offsets = [0, 0, 0, 0], sizes = [2, 8, 7, 128], strides = [1, 1, 1, 1]} : vector<2x8x8x128xf32> to vector<2x8x7x128xf32>
    %28 = tpu.concatenate %26, %27 in 2 : vector<2x8x1x128xf32>, vector<2x8x7x128xf32> -> vector<2x8x8x128xf32>
    %29 = arith.maximumf %23, %25 : vector<2x8x8x128xf32>
    %30 = arith.maximumf %29, %28 : vector<2x8x8x128xf32>
    %31 = vector.shape_cast %30 : vector<2x8x8x128xf32> to vector<2x64x128xf32>
    %cst_9 = arith.constant dense<0.000000e+00> : vector<2x128xf32>
    %32 = vector.multi_reduction <add>, %31, %cst_9 [1] : vector<2x64x128xf32> to vector<2x128xf32>
    %cst_10 = arith.constant 1.562500e-02 : f32
    %33 = vector.broadcast %cst_10 : f32 to vector<2x128xf32>
    %34 = arith.mulf %32, %33 : vector<2x128xf32>
    %35 = arith.truncf %34 : vector<2x128xf32> to vector<2x128xbf16>
    %c0_11 = arith.constant 0 : index
    %c0_12 = arith.constant 0 : index
    %36 = vector.load %arg4[%c0_11, %c0_12] : memref<128x128xbf16, #tpu.memory_space<vmem>>, vector<128x128xbf16>
    %cst_13 = arith.constant dense<0.000000e+00> : vector<2x128xf32>
    %37 = tpu.matmul %35, %36, %cst_13 {dimension_numbers = #tpu.dot_dimension_numbers<[1], [0], [0], [1], [0, 0, 1, 1], [], []>} : vector<2x128xbf16>, vector<128x128xbf16>, vector<2x128xf32> -> vector<2x128xf32>
    %c0_14 = arith.constant 0 : index
    %c0_15 = arith.constant 0 : index
    %38 = vector.load %arg5[%c0_14, %c0_15] : memref<1x128xf32, #tpu.memory_space<vmem>>, vector<1x128xf32>
    %39 = vector.broadcast %38 : vector<1x128xf32> to vector<2x128xf32>
    %40 = arith.addf %37, %39 : vector<2x128xf32>
    %c0_16 = arith.constant 0 : index
    %c0_17 = arith.constant 0 : index
    %c0_18 = arith.constant 0 : index
    %41 = vector.load %arg6[%c0_16, %c0_17, %c0_18] : memref<1x2x128xf32, #tpu.memory_space<vmem>>, vector<1x2x128xf32>
    %42 = vector.shape_cast %41 : vector<1x2x128xf32> to vector<2x128xf32>
    %43 = vector.shape_cast %40 : vector<2x128xf32> to vector<1x2x128xf32>
    tpu.vector_store %arg6[%c0_16, %c0_17, %c0_18], %43 {strides = array<i32>} : memref<1x2x128xf32, #tpu.memory_space<vmem>>, vector<1x2x128xf32>,
    return
  }
  func.func @transform_0(%arg0: i32) -> (i32, i32, i32, i32) {
    %c0_i32 = arith.constant 0 : i32
    %c0_i32_0 = arith.constant 0 : i32
    %c0_i32_1 = arith.constant 0 : i32
    %c0_i32_2 = arith.constant 0 : i32
    return %arg0, %c0_i32, %c0_i32_0, %c0_i32_1 : i32, i32, i32, i32
  }
  func.func @transform_1(%arg0: i32) -> (i32, i32) {
    %c0_i32 = arith.constant 0 : i32
    %c0_i32_0 = arith.constant 0 : i32
    %c0_i32_1 = arith.constant 0 : i32
    return %c0_i32, %c0_i32_0 : i32, i32
  }
  func.func @transform_2(%arg0: i32) -> (i32, i32) {
    %c0_i32 = arith.constant 0 : i32
    %c0_i32_0 = arith.constant 0 : i32
    %c0_i32_1 = arith.constant 0 : i32
    return %c0_i32, %c0_i32_0 : i32, i32
  }
  func.func @transform_3(%arg0: i32) -> (i32, i32) {
    %c0_i32 = arith.constant 0 : i32
    %c0_i32_0 = arith.constant 0 : i32
    %c0_i32_1 = arith.constant 0 : i32
    return %c0_i32, %c0_i32_0 : i32, i32
  }
  func.func @transform_4(%arg0: i32) -> (i32, i32) {
    %c0_i32 = arith.constant 0 : i32
    %c0_i32_0 = arith.constant 0 : i32
    %c0_i32_1 = arith.constant 0 : i32
    return %c0_i32, %c0_i32_0 : i32, i32
  }
  func.func @transform_5(%arg0: i32) -> (i32, i32, i32) {
    %c0_i32 = arith.constant 0 : i32
    %c0_i32_0 = arith.constant 0 : i32
    %c0_i32_1 = arith.constant 0 : i32
    return %arg0, %c0_i32, %c0_i32_0 : i32, i32, i32
  }
}

</mosaic_0001>

<llo_original>
// kernel: _lambda_.2
$region0: #{_lambda_.2}
  #allocation0 [shape = 'u32[]', space=smem, size = 0x4, offset = 0x4, fixed_abs, tag = 'smem constant byte address 0x4 - core index']
  #allocation1 [shape = 'u32[144,128]{1,0:T(1,128)}', space=vmem, size = 0x12000, scoped, tag = 'internal scratch']
  %s0 = inlined_call_operand.vmem [shape: bf16[2,2,128,256], index: 0, kind: input, shape index: {}]
  %s1 = inlined_call_operand.vmem [shape: bf16[256,128], index: 1, kind: input, shape index: {}]
  %s2 = inlined_call_operand.vmem [shape: bf16[2,2,128,128], index: 2, kind: output, shape index: {0}]
  %s3 = inlined_call_operand.vmem [shape: f32[1,1,128], index: 3, kind: output, shape index: {1}]
  %s4 = inlined_call_operand.vmem [shape: f32[1,1,128], index: 4, kind: output, shape index: {2}]
  %5 = xla_tuple %s2, %s3, %s4
  %s6 = sld [smem:[#allocation0]]
  $region34: #{_lambda_.2} parent=0
    _
  %s8 = ssub.s32 1, %s6
  %s9 = scalar_select 0, %s8, %s6
  // Predicated region
  $region2: #{_lambda_.2} parent=0 // pred_check
    _
  $region3: #{_lambda_.2} parent=0 // pred_check_branch
    %11 = sbr.rel (0) target = $region5
  $region4: #{_lambda_.2} parent=0 // pred_region
    _
  $region5: #{_lambda_.2} parent=0 // pred_fallthru
    _
  // Predicated region
  $region6: #{_lambda_.2} parent=0 // pred_check
    _
  $region7: #{_lambda_.2} parent=0 // pred_check_branch
    %13 = sbr.rel (0) target = $region9
  $region8: #{_lambda_.2} parent=0 // pred_region
    _
  $region9: #{_lambda_.2} parent=0 // pred_fallthru
    _
  %v15 = vld [vmem:[%s0] sm:$0xff]
  %v16 = vld [vmem:[%s0 + $0x8] sm:$0xff]
  %v17 = vld [vmem:[%s0 + $0x10] sm:$0xff]
  %v18 = vld [vmem:[%s0 + $0x18] sm:$0xff]
  %v19 = vld [vmem:[%s0 + $0x20] sm:$0xff]
  %v20 = vld [vmem:[%s0 + $0x28] sm:$0xff]
  %v21 = vld [vmem:[%s0 + $0x30] sm:$0xff]
  %v22 = vld [vmem:[%s0 + $0x38] sm:$0xff]
  %v23 = vld [vmem:[%s0 + $0x40] sm:$0xff]
  %v24 = vld [vmem:[%s0 + $0x48] sm:$0xff]
  %v25 = vld [vmem:[%s0 + $0x50] sm:$0xff]
  %v26 = vld [vmem:[%s0 + $0x58] sm:$0xff]
  %v27 = vld [vmem:[%s0 + $0x60] sm:$0xff]
  %v28 = vld [vmem:[%s0 + $0x68] sm:$0xff]
  %v29 = vld [vmem:[%s0 + $0x70] sm:$0xff]
  %v30 = vld [vmem:[%s0 + $0x78] sm:$0xff]
  %v31 = vld [vmem:[%s0 + $0x80] sm:$0xff]
  %v32 = vld [vmem:[%s0 + $0x88] sm:$0xff]
  %v33 = vld [vmem:[%s0 + $0x90] sm:$0xff]
  %v34 = vld [vmem:[%s0 + $0x98] sm:$0xff]
  %v35 = vld [vmem:[%s0 + $0xa0] sm:$0xff]
  %v36 = vld [vmem:[%s0 + $0xa8] sm:$0xff]
  %v37 = vld [vmem:[%s0 + $0xb0] sm:$0xff]
  %v38 = vld [vmem:[%s0 + $0xb8] sm:$0xff]
  %v39 = vld [vmem:[%s0 + $0xc0] sm:$0xff]
  %v40 = vld [vmem:[%s0 + $0xc8] sm:$0xff]
  %v41 = vld [vmem:[%s0 + $0xd0] sm:$0xff]
  %v42 = vld [vmem:[%s0 + $0xd8] sm:$0xff]
  %v43 = vld [vmem:[%s0 + $0xe0] sm:$0xff]
  %v44 = vld [vmem:[%s0 + $0xe8] sm:$0xff]
  %v45 = vld [vmem:[%s0 + $0xf0] sm:$0xff]
  %v46 = vld [vmem:[%s0 + $0xf8] sm:$0xff]
  %v47 = vld [vmem:[%s0 + $0x100] sm:$0xff]
  %v48 = vld [vmem:[%s0 + $0x108] sm:$0xff]
  %v49 = vld [vmem:[%s0 + $0x110] sm:$0xff]
  %v50 = vld [vmem:[%s0 + $0x118] sm:$0xff]
  %v51 = vld [vmem:[%s0 + $0x120] sm:$0xff]
  %v52 = vld [vmem:[%s0 + $0x128] sm:$0xff]
  %v53 = vld [vmem:[%s0 + $0x130] sm:$0xff]
  %v54 = vld [vmem:[%s0 + $0x138] sm:$0xff]
  %v55 = vld [vmem:[%s0 + $0x140] sm:$0xff]
  %v56 = vld [vmem:[%s0 + $0x148] sm:$0xff]
  %v57 = vld [vmem:[%s0 + $0x150] sm:$0xff]
  %v58 = vld [vmem:[%s0 + $0x158] sm:$0xff]
  %v59 = vld [vmem:[%s0 + $0x160] sm:$0xff]
  %v60 = vld [vmem:[%s0 + $0x168] sm:$0xff]
  %v61 = vld [vmem:[%s0 + $0x170] sm:$0xff]
  %v62 = vld [vmem:[%s0 + $0x178] sm:$0xff]
  %v63 = vld [vmem:[%s0 + $0x180] sm:$0xff]
  %v64 = vld [vmem:[%s0 + $0x188] sm:$0xff]
  %v65 = vld [vmem:[%s0 + $0x190] sm:$0xff]
  %v66 = vld [vmem:[%s0 + $0x198] sm:$0xff]
  %v67 = vld [vmem:[%s0 + $0x1a0] sm:$0xff]
  %v68 = vld [vmem:[%s0 + $0x1a8] sm:$0xff]
  %v69 = vld [vmem:[%s0 + $0x1b0] sm:$0xff]
  %v70 = vld [vmem:[%s0 + $0x1b8] sm:$0xff]
  %v71 = vld [vmem:[%s0 + $0x1c0] sm:$0xff]
  %v72 = vld [vmem:[%s0 + $0x1c8] sm:$0xff]
  %v73 = vld [vmem:[%s0 + $0x1d0] sm:$0xff]
  %v74 = vld [vmem:[%s0 + $0x1d8] sm:$0xff]
  %v75 = vld [vmem:[%s0 + $0x1e0] sm:$0xff]
  %v76 = vld [vmem:[%s0 + $0x1e8] sm:$0xff]
  %v77 = vld [vmem:[%s0 + $0x1f0] sm:$0xff]
  %v78 = vld [vmem:[%s0 + $0x1f8] sm:$0xff]
  %v79 = vld [vmem:[%s1] sm:$0xf]
  %v80 = vld [vmem:[%s1 + $0x4] sm:$0xf]
  %v81 = vld [vmem:[%s1 + $0x8] sm:$0xf]
  %v82 = vld [vmem:[%s1 + $0xc] sm:$0xf]
  %v83 = vld [vmem:[%s1 + $0x10] sm:$0xf]
  %v84 = vld [vmem:[%s1 + $0x14] sm:$0xf]
  %v85 = vld [vmem:[%s1 + $0x18] sm:$0xf]
  %v86 = vld [vmem:[%s1 + $0x1c] sm:$0xf]
  %v87 = vld [vmem:[%s1 + $0x20] sm:$0xf]
  %v88 = vld [vmem:[%s1 + $0x24] sm:$0xf]
  %v89 = vld [vmem:[%s1 + $0x28] sm:$0xf]
  %v90 = vld [vmem:[%s1 + $0x2c] sm:$0xf]
  %v91 = vld [vmem:[%s1 + $0x30] sm:$0xf]
  %v92 = vld [vmem:[%s1 + $0x34] sm:$0xf]
  %v93 = vld [vmem:[%s1 + $0x38] sm:$0xf]
  %v94 = vld [vmem:[%s1 + $0x3c] sm:$0xf]
  %v95 = vld [vmem:[%s1 + $0x40] sm:$0xf]
  %v96 = vld [vmem:[%s1 + $0x44] sm:$0xf]
  %v97 = vld [vmem:[%s1 + $0x48] sm:$0xf]
  %v98 = vld [vmem:[%s1 + $0x4c] sm:$0xf]
  %v99 = vld [vmem:[%s1 + $0x50] sm:$0xf]
  %v100 = vld [vmem:[%s1 + $0x54] sm:$0xf]
  %v101 = vld [vmem:[%s1 + $0x58] sm:$0xf]
  %v102 = vld [vmem:[%s1 + $0x5c] sm:$0xf]
  %v103 = vld [vmem:[%s1 + $0x60] sm:$0xf]
  %v104 = vld [vmem:[%s1 + $0x64] sm:$0xf]
  %v105 = vld [vmem:[%s1 + $0x68] sm:$0xf]
  %v106 = vld [vmem:[%s1 + $0x6c] sm:$0xf]
  %v107 = vld [vmem:[%s1 + $0x70] sm:$0xf]
  %v108 = vld [vmem:[%s1 + $0x74] sm:$0xf]
  %v109 = vld [vmem:[%s1 + $0x78] sm:$0xf]
  %v110 = vld [vmem:[%s1 + $0x7c] sm:$0xf]
  %v175 = vunpack.c.l.b16 %v15
  %v176 = vunpack.c.h.b16 %v15
  %v177 = vunpack.c.l.b16 %v16
  %v178 = vunpack.c.h.b16 %v16
  %v179 = vunpack.c.l.b16 %v17
  %v180 = vunpack.c.h.b16 %v17
  %v181 = vunpack.c.l.b16 %v18
  %v182 = vunpack.c.h.b16 %v18
  %v183 = vunpack.c.l.b16 %v19
  %v184 = vunpack.c.h.b16 %v19
  %v185 = vunpack.c.l.b16 %v20
  %v186 = vunpack.c.h.b16 %v20
  %v187 = vunpack.c.l.b16 %v21
  %v188 = vunpack.c.h.b16 %v21
  %v189 = vunpack.c.l.b16 %v22
  %v190 = vunpack.c.h.b16 %v22
  %v191 = vunpack.c.l.b16 %v23
  %v192 = vunpack.c.h.b16 %v23
  %v193 = vunpack.c.l.b16 %v24
  %v194 = vunpack.c.h.b16 %v24
  %v195 = vunpack.c.l.b16 %v25
  %v196 = vunpack.c.h.b16 %v25
  %v197 = vunpack.c.l.b16 %v26
  %v198 = vunpack.c.h.b16 %v26
  %v199 = vunpack.c.l.b16 %v27
  %v200 = vunpack.c.h.b16 %v27
  %v201 = vunpack.c.l.b16 %v28
  %v202 = vunpack.c.h.b16 %v28
  %v203 = vunpack.c.l.b16 %v29
  %v204 = vunpack.c.h.b16 %v29
  %v205 = vunpack.c.l.b16 %v30
  %v206 = vunpack.c.h.b16 %v30
  %v207 = vunpack.c.l.b16 %v31
  %v208 = vunpack.c.h.b16 %v31
  %v209 = vunpack.c.l.b16 %v32
  %v210 = vunpack.c.h.b16 %v32
  %v211 = vunpack.c.l.b16 %v33
  %v212 = vunpack.c.h.b16 %v33
  %v213 = vunpack.c.l.b16 %v34
  %v214 = vunpack.c.h.b16 %v34
  %v215 = vunpack.c.l.b16 %v35
  %v216 = vunpack.c.h.b16 %v35
  %v217 = vunpack.c.l.b16 %v36
  %v218 = vunpack.c.h.b16 %v36
  %v219 = vunpack.c.l.b16 %v37
  %v220 = vunpack.c.h.b16 %v37
  %v221 = vunpack.c.l.b16 %v38
  %v222 = vunpack.c.h.b16 %v38
  %v223 = vunpack.c.l.b16 %v39
  %v224 = vunpack.c.h.b16 %v39
  %v225 = vunpack.c.l.b16 %v40
  %v226 = vunpack.c.h.b16 %v40
  %v227 = vunpack.c.l.b16 %v41
  %v228 = vunpack.c.h.b16 %v41
  %v229 = vunpack.c.l.b16 %v42
  %v230 = vunpack.c.h.b16 %v42
  %v231 = vunpack.c.l.b16 %v43
  %v232 = vunpack.c.h.b16 %v43
  %v233 = vunpack.c.l.b16 %v44
  %v234 = vunpack.c.h.b16 %v44
  %v235 = vunpack.c.l.b16 %v45
  %v236 = vunpack.c.h.b16 %v45
  %v237 = vunpack.c.l.b16 %v46
  %v238 = vunpack.c.h.b16 %v46
  %v239 = vunpack.c.l.b16 %v47
  %v240 = vunpack.c.h.b16 %v47
  %v241 = vunpack.c.l.b16 %v48
  %v242 = vunpack.c.h.b16 %v48
  %v243 = vunpack.c.l.b16 %v49
  %v244 = vunpack.c.h.b16 %v49
  %v245 = vunpack.c.l.b16 %v50
  %v246 = vunpack.c.h.b16 %v50
  %v247 = vunpack.c.l.b16 %v51
  %v248 = vunpack.c.h.b16 %v51
  %v249 = vunpack.c.l.b16 %v52
  %v250 = vunpack.c.h.b16 %v52
  %v251 = vunpack.c.l.b16 %v53
  %v252 = vunpack.c.h.b16 %v53
  %v253 = vunpack.c.l.b16 %v54
  %v254 = vunpack.c.h.b16 %v54
  %v255 = vunpack.c.l.b16 %v55
  %v256 = vunpack.c.h.b16 %v55
  %v257 = vunpack.c.l.b16 %v56
  %v258 = vunpack.c.h.b16 %v56
  %v259 = vunpack.c.l.b16 %v57
  %v260 = vunpack.c.h.b16 %v57
  %v261 = vunpack.c.l.b16 %v58
  %v262 = vunpack.c.h.b16 %v58
  %v263 = vunpack.c.l.b16 %v59
  %v264 = vunpack.c.h.b16 %v59
  %v265 = vunpack.c.l.b16 %v60
  %v266 = vunpack.c.h.b16 %v60
  %v267 = vunpack.c.l.b16 %v61
  %v268 = vunpack.c.h.b16 %v61
  %v269 = vunpack.c.l.b16 %v62
  %v270 = vunpack.c.h.b16 %v62
  %v271 = vunpack.c.l.b16 %v63
  %v272 = vunpack.c.h.b16 %v63
  %v273 = vunpack.c.l.b16 %v64
  %v274 = vunpack.c.h.b16 %v64
  %v275 = vunpack.c.l.b16 %v65
  %v276 = vunpack.c.h.b16 %v65
  %v277 = vunpack.c.l.b16 %v66
  %v278 = vunpack.c.h.b16 %v66
  %v279 = vunpack.c.l.b16 %v67
  %v280 = vunpack.c.h.b16 %v67
  %v281 = vunpack.c.l.b16 %v68
  %v282 = vunpack.c.h.b16 %v68
  %v283 = vunpack.c.l.b16 %v69
  %v284 = vunpack.c.h.b16 %v69
  %v285 = vunpack.c.l.b16 %v70
  %v286 = vunpack.c.h.b16 %v70
  %v287 = vunpack.c.l.b16 %v71
  %v288 = vunpack.c.h.b16 %v71
  %v289 = vunpack.c.l.b16 %v72
  %v290 = vunpack.c.h.b16 %v72
  %v291 = vunpack.c.l.b16 %v73
  %v292 = vunpack.c.h.b16 %v73
  %v293 = vunpack.c.l.b16 %v74
  %v294 = vunpack.c.h.b16 %v74
  %v295 = vunpack.c.l.b16 %v75
  %v296 = vunpack.c.h.b16 %v75
  %v297 = vunpack.c.l.b16 %v76
  %v298 = vunpack.c.h.b16 %v76
  %v299 = vunpack.c.l.b16 %v77
  %v300 = vunpack.c.h.b16 %v77
  %v301 = vunpack.c.l.b16 %v78
  %v302 = vunpack.c.h.b16 %v78
  %v303 = vpack.c.b16 %v177, %v175
  %v304 = vpack.c.b16 %v178, %v176
  %v305 = vpack.c.b16 %v181, %v179
  %v306 = vpack.c.b16 %v182, %v180
  %v307 = vpack.c.b16 %v185, %v183
  %v308 = vpack.c.b16 %v186, %v184
  %v309 = vpack.c.b16 %v189, %v187
  %v310 = vpack.c.b16 %v190, %v188
  %v311 = vpack.c.b16 %v193, %v191
  %v312 = vpack.c.b16 %v194, %v192
  %v313 = vpack.c.b16 %v197, %v195
  %v314 = vpack.c.b16 %v198, %v196
  %v315 = vpack.c.b16 %v201, %v199
  %v316 = vpack.c.b16 %v202, %v200
  %v317 = vpack.c.b16 %v205, %v203
  %v318 = vpack.c.b16 %v206, %v204
  %v319 = vpack.c.b16 %v209, %v207
  %v320 = vpack.c.b16 %v210, %v208
  %v321 = vpack.c.b16 %v213, %v211
  %v322 = vpack.c.b16 %v214, %v212
  %v323 = vpack.c.b16 %v217, %v215
  %v324 = vpack.c.b16 %v218, %v216
  %v325 = vpack.c.b16 %v221, %v219
  %v326 = vpack.c.b16 %v222, %v220
  %v327 = vpack.c.b16 %v225, %v223
  %v328 = vpack.c.b16 %v226, %v224
  %v329 = vpack.c.b16 %v229, %v227
  %v330 = vpack.c.b16 %v230, %v228
  %v331 = vpack.c.b16 %v233, %v231
  %v332 = vpack.c.b16 %v234, %v232
  %v333 = vpack.c.b16 %v237, %v235
  %v334 = vpack.c.b16 %v238, %v236
  %v335 = vpack.c.b16 %v241, %v239
  %v336 = vpack.c.b16 %v242, %v240
  %v337 = vpack.c.b16 %v245, %v243
  %v338 = vpack.c.b16 %v246, %v244
  %v339 = vpack.c.b16 %v249, %v247
  %v340 = vpack.c.b16 %v250, %v248
  %v341 = vpack.c.b16 %v253, %v251
  %v342 = vpack.c.b16 %v254, %v252
  %v343 = vpack.c.b16 %v257, %v255
  %v344 = vpack.c.b16 %v258, %v256
  %v345 = vpack.c.b16 %v261, %v259
  %v346 = vpack.c.b16 %v262, %v260
  %v347 = vpack.c.b16 %v265, %v263
  %v348 = vpack.c.b16 %v266, %v264
  %v349 = vpack.c.b16 %v269, %v267
  %v350 = vpack.c.b16 %v270, %v268
  %v351 = vpack.c.b16 %v273, %v271
  %v352 = vpack.c.b16 %v274, %v272
  %v353 = vpack.c.b16 %v277, %v275
  %v354 = vpack.c.b16 %v278, %v276
  %v355 = vpack.c.b16 %v281, %v279
  %v356 = vpack.c.b16 %v282, %v280
  %v357 = vpack.c.b16 %v285, %v283
  %v358 = vpack.c.b16 %v286, %v284
  %v359 = vpack.c.b16 %v289, %v287
  %v360 = vpack.c.b16 %v290, %v288
  %v361 = vpack.c.b16 %v293, %v291
  %v362 = vpack.c.b16 %v294, %v292
  %v363 = vpack.c.b16 %v297, %v295
  %v364 = vpack.c.b16 %v298, %v296
  %v365 = vpack.c.b16 %v301, %v299
  %v366 = vpack.c.b16 %v302, %v300
  %v463 = vunpack.c.l.b16 %v79
  %v464 = vunpack.c.l.b16 %v80
  %v465 = vunpack.c.l.b16 %v81
  %v466 = vunpack.c.l.b16 %v82
  %v467 = vunpack.c.l.b16 %v83
  %v468 = vunpack.c.l.b16 %v84
  %v469 = vunpack.c.l.b16 %v85
  %v470 = vunpack.c.l.b16 %v86
  %v471 = vunpack.c.l.b16 %v87
  %v472 = vunpack.c.l.b16 %v88
  %v473 = vunpack.c.l.b16 %v89
  %v474 = vunpack.c.l.b16 %v90
  %v475 = vunpack.c.l.b16 %v91
  %v476 = vunpack.c.l.b16 %v92
  %v477 = vunpack.c.l.b16 %v93
  %v478 = vunpack.c.l.b16 %v94
  %v479 = vunpack.c.l.b16 %v95
  %v480 = vunpack.c.l.b16 %v96
  %v481 = vunpack.c.l.b16 %v97
  %v482 = vunpack.c.l.b16 %v98
  %v483 = vunpack.c.l.b16 %v99
  %v484 = vunpack.c.l.b16 %v100
  %v485 = vunpack.c.l.b16 %v101
  %v486 = vunpack.c.l.b16 %v102
  %v487 = vunpack.c.l.b16 %v103
  %v488 = vunpack.c.l.b16 %v104
  %v489 = vunpack.c.l.b16 %v105
  %v490 = vunpack.c.l.b16 %v106
  %v491 = vunpack.c.l.b16 %v107
  %v492 = vunpack.c.l.b16 %v108
  %v493 = vunpack.c.l.b16 %v109
  %v494 = vunpack.c.l.b16 %v110
  %v495 = vpack.c.b16 %v464, %v463
  %v496 = vpack.c.b16 %v466, %v465
  %v497 = vpack.c.b16 %v468, %v467
  %v498 = vpack.c.b16 %v470, %v469
  %v499 = vpack.c.b16 %v472, %v471
  %v500 = vpack.c.b16 %v474, %v473
  %v501 = vpack.c.b16 %v476, %v475
  %v502 = vpack.c.b16 %v478, %v477
  %v503 = vpack.c.b16 %v480, %v479
  %v504 = vpack.c.b16 %v482, %v481
  %v505 = vpack.c.b16 %v484, %v483
  %v506 = vpack.c.b16 %v486, %v485
  %v507 = vpack.c.b16 %v488, %v487
  %v508 = vpack.c.b16 %v490, %v489
  %v509 = vpack.c.b16 %v492, %v491
  %v510 = vpack.c.b16 %v494, %v493
  %527 = vmatprep.subr.bf16.mxu0 0
  %528 = vmatpush1.bf16.msra.mxu0 %v502
  %529 = vmatprep.subr.bf16.mxu0 0
  %530 = vmatpush1.bf16.msra.mxu0 %v501
  %531 = vmatprep.subr.bf16.mxu0 0
  %532 = vmatpush1.bf16.msra.mxu0 %v500
  %533 = vmatprep.subr.bf16.mxu0 0
  %534 = vmatpush1.bf16.msra.mxu0 %v499
  %535 = vmatprep.subr.bf16.mxu0 0
  %536 = vmatpush1.bf16.msra.mxu0 %v498
  %537 = vmatprep.subr.bf16.mxu0 0
  %538 = vmatpush1.bf16.msra.mxu0 %v497
  %539 = vmatprep.subr.bf16.mxu0 0
  %540 = vmatpush1.bf16.msra.mxu0 %v496
  %541 = vmatprep.subr.bf16.mxu0 0
  %542 = vmatpush1.bf16.msra.mxu0 %v495
  %543 = vmatprep.subr.bf16.mxu0 0
  %544 = vmatpush2.bf16.msra.mxu0 %v510
  %545 = vmatprep.subr.bf16.mxu0 0
  %546 = vmatpush2.bf16.msra.mxu0 %v509
  %547 = vmatprep.subr.bf16.mxu0 0
  %548 = vmatpush2.bf16.msra.mxu0 %v508
  %549 = vmatprep.subr.bf16.mxu0 0
  %550 = vmatpush2.bf16.msra.mxu0 %v507
  %551 = vmatprep.subr.bf16.mxu0 0
  %552 = vmatpush2.bf16.msra.mxu0 %v506
  %553 = vmatprep.subr.bf16.mxu0 0
  %554 = vmatpush2.bf16.msra.mxu0 %v505
  %555 = vmatprep.subr.bf16.mxu0 0
  %556 = vmatpush2.bf16.msra.mxu0 %v504
  %557 = vmatprep.subr.bf16.mxu0 0
  %558 = vmatpush2.bf16.msra.mxu0 %v503
  %559 = vmatprep.mubr.bf16.mxu0 %v304
  %560 = vmatmul.mubr.bf16.gmra.mxu0 %v303
  %v561 = vpop.f32.mrf.mxu0
  %v562 = vadd.f32 0.0, %v561
  %v563 = vpop.f32.mrf.mxu0
  %v564 = vpop.f32.mrf.mxu0
  %v565 = vadd.f32 0.0, %v564
  %v566 = vpop.f32.mrf.mxu0
  %567 = vmatprep.mubr.bf16.mxu0 %v306
  %568 = vmatmul.mubr.bf16.gmra.mxu0 %v305
  %v569 = vpop.f32.mrf.mxu0
  %v570 = vadd.f32 0.0, %v569
  %v571 = vpop.f32.mrf.mxu0
  %v572 = vpop.f32.mrf.mxu0
  %v573 = vadd.f32 0.0, %v572
  %v574 = vpop.f32.mrf.mxu0
  %575 = vmatprep.mubr.bf16.mxu0 %v308
  %576 = vmatmul.mubr.bf16.gmra.mxu0 %v307
  %v577 = vpop.f32.mrf.mxu0
  %v578 = vadd.f32 0.0, %v577
  %v579 = vpop.f32.mrf.mxu0
  %v580 = vpop.f32.mrf.mxu0
  %v581 = vadd.f32 0.0, %v580
  %v582 = vpop.f32.mrf.mxu0
  %583 = vmatprep.mubr.bf16.mxu0 %v310
  %584 = vmatmul.mubr.bf16.gmra.mxu0 %v309
  %v585 = vpop.f32.mrf.mxu0
  %v586 = vadd.f32 0.0, %v585
  %v587 = vpop.f32.mrf.mxu0
  %v588 = vpop.f32.mrf.mxu0
  %v589 = vadd.f32 0.0, %v588
  %v590 = vpop.f32.mrf.mxu0
  %591 = vmatprep.mubr.bf16.mxu0 %v312
  %592 = vmatmul.mubr.bf16.gmra.mxu0 %v311
  %v593 = vpop.f32.mrf.mxu0
  %v594 = vadd.f32 0.0, %v593
  %v595 = vpop.f32.mrf.mxu0
  %v596 = vpop.f32.mrf.mxu0
  %v597 = vadd.f32 0.0, %v596
  %v598 = vpop.f32.mrf.mxu0
  %599 = vmatprep.mubr.bf16.mxu0 %v314
  %600 = vmatmul.mubr.bf16.gmra.mxu0 %v313
  %v601 = vpop.f32.mrf.mxu0
  %v602 = vadd.f32 0.0, %v601
  %v603 = vpop.f32.mrf.mxu0
  %v604 = vpop.f32.mrf.mxu0
  %v605 = vadd.f32 0.0, %v604
  %v606 = vpop.f32.mrf.mxu0
  %607 = vmatprep.mubr.bf16.mxu0 %v316
  %608 = vmatmul.mubr.bf16.gmra.mxu0 %v315
  %v609 = vpop.f32.mrf.mxu0
  %v610 = vadd.f32 0.0, %v609
  %v611 = vpop.f32.mrf.mxu0
  %v612 = vpop.f32.mrf.mxu0
  %v613 = vadd.f32 0.0, %v612
  %v614 = vpop.f32.mrf.mxu0
  %615 = vmatprep.mubr.bf16.mxu0 %v318
  %616 = vmatmul.mubr.bf16.gmra.mxu0 %v317
  %v617 = vpop.f32.mrf.mxu0
  %v618 = vadd.f32 0.0, %v617
  %v619 = vpop.f32.mrf.mxu0
  %v620 = vpop.f32.mrf.mxu0
  %v621 = vadd.f32 0.0, %v620
  %v622 = vpop.f32.mrf.mxu0
  %623 = vmatprep.mubr.bf16.mxu0 %v320
  %624 = vmatmul.mubr.bf16.gmra.mxu0 %v319
  %v625 = vpop.f32.mrf.mxu0
  %v626 = vadd.f32 0.0, %v625
  %v627 = vpop.f32.mrf.mxu0
  %v628 = vpop.f32.mrf.mxu0
  %v629 = vadd.f32 0.0, %v628
  %v630 = vpop.f32.mrf.mxu0
  %631 = vmatprep.mubr.bf16.mxu0 %v322
  %632 = vmatmul.mubr.bf16.gmra.mxu0 %v321
  %v633 = vpop.f32.mrf.mxu0
  %v634 = vadd.f32 0.0, %v633
  %v635 = vpop.f32.mrf.mxu0
  %v636 = vpop.f32.mrf.mxu0
  %v637 = vadd.f32 0.0, %v636
  %v638 = vpop.f32.mrf.mxu0
  %639 = vmatprep.mubr.bf16.mxu0 %v324
  %640 = vmatmul.mubr.bf16.gmra.mxu0 %v323
  %v641 = vpop.f32.mrf.mxu0
  %v642 = vadd.f32 0.0, %v641
  %v643 = vpop.f32.mrf.mxu0
  %v644 = vpop.f32.mrf.mxu0
  %v645 = vadd.f32 0.0, %v644
  %v646 = vpop.f32.mrf.mxu0
  %647 = vmatprep.mubr.bf16.mxu0 %v326
  %648 = vmatmul.mubr.bf16.gmra.mxu0 %v325
  %v649 = vpop.f32.mrf.mxu0
  %v650 = vadd.f32 0.0, %v649
  %v651 = vpop.f32.mrf.mxu0
  %v652 = vpop.f32.mrf.mxu0
  %v653 = vadd.f32 0.0, %v652
  %v654 = vpop.f32.mrf.mxu0
  %655 = vmatprep.mubr.bf16.mxu0 %v328
  %656 = vmatmul.mubr.bf16.gmra.mxu0 %v327
  %v657 = vpop.f32.mrf.mxu0
  %v658 = vadd.f32 0.0, %v657
  %v659 = vpop.f32.mrf.mxu0
  %v660 = vpop.f32.mrf.mxu0
  %v661 = vadd.f32 0.0, %v660
  %v662 = vpop.f32.mrf.mxu0
  %663 = vmatprep.mubr.bf16.mxu0 %v330
  %664 = vmatmul.mubr.bf16.gmra.mxu0 %v329
  %v665 = vpop.f32.mrf.mxu0
  %v666 = vadd.f32 0.0, %v665
  %v667 = vpop.f32.mrf.mxu0
  %v668 = vpop.f32.mrf.mxu0
  %v669 = vadd.f32 0.0, %v668
  %v670 = vpop.f32.mrf.mxu0
  %671 = vmatprep.mubr.bf16.mxu0 %v332
  %672 = vmatmul.mubr.bf16.gmra.mxu0 %v331
  %v673 = vpop.f32.mrf.mxu0
  %v674 = vadd.f32 0.0, %v673
  %v675 = vpop.f32.mrf.mxu0
  %v676 = vpop.f32.mrf.mxu0
  %v677 = vadd.f32 0.0, %v676
  %v678 = vpop.f32.mrf.mxu0
  %679 = vmatprep.mubr.bf16.mxu0 %v334
  %680 = vmatmul.mubr.bf16.gmra.mxu0 %v333
  %v681 = vpop.f32.mrf.mxu0
  %v682 = vadd.f32 0.0, %v681
  %v683 = vpop.f32.mrf.mxu0
  %v684 = vpop.f32.mrf.mxu0
  %v685 = vadd.f32 0.0, %v684
  %v686 = vpop.f32.mrf.mxu0
  %687 = vmatprep.mubr.bf16.mxu0 %v336
  %688 = vmatmul.mubr.bf16.gmra.mxu0 %v335
  %v689 = vpop.f32.mrf.mxu0
  %v690 = vadd.f32 0.0, %v689
  %v691 = vpop.f32.mrf.mxu0
  %v692 = vpop.f32.mrf.mxu0
  %v693 = vadd.f32 0.0, %v692
  %v694 = vpop.f32.mrf.mxu0
  %695 = vmatprep.mubr.bf16.mxu0 %v338
  %696 = vmatmul.mubr.bf16.gmra.mxu0 %v337
  %v697 = vpop.f32.mrf.mxu0
  %v698 = vadd.f32 0.0, %v697
  %v699 = vpop.f32.mrf.mxu0
  %v700 = vpop.f32.mrf.mxu0
  %v701 = vadd.f32 0.0, %v700
  %v702 = vpop.f32.mrf.mxu0
  %703 = vmatprep.mubr.bf16.mxu0 %v340
  %704 = vmatmul.mubr.bf16.gmra.mxu0 %v339
  %v705 = vpop.f32.mrf.mxu0
  %v706 = vadd.f32 0.0, %v705
  %v707 = vpop.f32.mrf.mxu0
  %v708 = vpop.f32.mrf.mxu0
  %v709 = vadd.f32 0.0, %v708
  %v710 = vpop.f32.mrf.mxu0
  %711 = vmatprep.mubr.bf16.mxu0 %v342
  %712 = vmatmul.mubr.bf16.gmra.mxu0 %v341
  %v713 = vpop.f32.mrf.mxu0
  %v714 = vadd.f32 0.0, %v713
  %v715 = vpop.f32.mrf.mxu0
  %v716 = vpop.f32.mrf.mxu0
  %v717 = vadd.f32 0.0, %v716
  %v718 = vpop.f32.mrf.mxu0
  %719 = vmatprep.mubr.bf16.mxu0 %v344
  %720 = vmatmul.mubr.bf16.gmra.mxu0 %v343
  %v721 = vpop.f32.mrf.mxu0
  %v722 = vadd.f32 0.0, %v721
  %v723 = vpop.f32.mrf.mxu0
  %v724 = vpop.f32.mrf.mxu0
  %v725 = vadd.f32 0.0, %v724
  %v726 = vpop.f32.mrf.mxu0
  %727 = vmatprep.mubr.bf16.mxu0 %v346
  %728 = vmatmul.mubr.bf16.gmra.mxu0 %v345
  %v729 = vpop.f32.mrf.mxu0
  %v730 = vadd.f32 0.0, %v729
  %v731 = vpop.f32.mrf.mxu0
  %v732 = vpop.f32.mrf.mxu0
  %v733 = vadd.f32 0.0, %v732
  %v734 = vpop.f32.mrf.mxu0
  %735 = vmatprep.mubr.bf16.mxu0 %v348
  %736 = vmatmul.mubr.bf16.gmra.mxu0 %v347
  %v737 = vpop.f32.mrf.mxu0
  %v738 = vadd.f32 0.0, %v737
  %v739 = vpop.f32.mrf.mxu0
  %v740 = vpop.f32.mrf.mxu0
  %v741 = vadd.f32 0.0, %v740
  %v742 = vpop.f32.mrf.mxu0
  %743 = vmatprep.mubr.bf16.mxu0 %v350
  %744 = vmatmul.mubr.bf16.gmra.mxu0 %v349
  %v745 = vpop.f32.mrf.mxu0
  %v746 = vadd.f32 0.0, %v745
  %v747 = vpop.f32.mrf.mxu0
  %v748 = vpop.f32.mrf.mxu0
  %v749 = vadd.f32 0.0, %v748
  %v750 = vpop.f32.mrf.mxu0
  %751 = vmatprep.mubr.bf16.mxu0 %v352
  %752 = vmatmul.mubr.bf16.gmra.mxu0 %v351
  %v753 = vpop.f32.mrf.mxu0
  %v754 = vadd.f32 0.0, %v753
  %v755 = vpop.f32.mrf.mxu0
  %v756 = vpop.f32.mrf.mxu0
  %v757 = vadd.f32 0.0, %v756
  %v758 = vpop.f32.mrf.mxu0
  %759 = vmatprep.mubr.bf16.mxu0 %v354
  %760 = vmatmul.mubr.bf16.gmra.mxu0 %v353
  %v761 = vpop.f32.mrf.mxu0
  %v762 = vadd.f32 0.0, %v761
  %v763 = vpop.f32.mrf.mxu0
  %v764 = vpop.f32.mrf.mxu0
  %v765 = vadd.f32 0.0, %v764
  %v766 = vpop.f32.mrf.mxu0
  %767 = vmatprep.mubr.bf16.mxu0 %v356
  %768 = vmatmul.mubr.bf16.gmra.mxu0 %v355
  %v769 = vpop.f32.mrf.mxu0
  %v770 = vadd.f32 0.0, %v769
  %v771 = vpop.f32.mrf.mxu0
  %v772 = vpop.f32.mrf.mxu0
  %v773 = vadd.f32 0.0, %v772
  %v774 = vpop.f32.mrf.mxu0
  %775 = vmatprep.mubr.bf16.mxu0 %v358
  %776 = vmatmul.mubr.bf16.gmra.mxu0 %v357
  %v777 = vpop.f32.mrf.mxu0
  %v778 = vadd.f32 0.0, %v777
  %v779 = vpop.f32.mrf.mxu0
  %v780 = vpop.f32.mrf.mxu0
  %v781 = vadd.f32 0.0, %v780
  %v782 = vpop.f32.mrf.mxu0
  %783 = vmatprep.mubr.bf16.mxu0 %v360
  %784 = vmatmul.mubr.bf16.gmra.mxu0 %v359
  %v785 = vpop.f32.mrf.mxu0
  %v786 = vadd.f32 0.0, %v785
  %v787 = vpop.f32.mrf.mxu0
  %v788 = vpop.f32.mrf.mxu0
  %v789 = vadd.f32 0.0, %v788
  %v790 = vpop.f32.mrf.mxu0
  %791 = vmatprep.mubr.bf16.mxu0 %v362
  %792 = vmatmul.mubr.bf16.gmra.mxu0 %v361
  %v793 = vpop.f32.mrf.mxu0
  %v794 = vadd.f32 0.0, %v793
  %v795 = vpop.f32.mrf.mxu0
  %v796 = vpop.f32.mrf.mxu0
  %v797 = vadd.f32 0.0, %v796
  %v798 = vpop.f32.mrf.mxu0
  %799 = vmatprep.mubr.bf16.mxu0 %v364
  %800 = vmatmul.mubr.bf16.gmra.mxu0 %v363
  %v801 = vpop.f32.mrf.mxu0
  %v802 = vadd.f32 0.0, %v801
  %v803 = vpop.f32.mrf.mxu0
  %v804 = vpop.f32.mrf.mxu0
  %v805 = vadd.f32 0.0, %v804
  %v806 = vpop.f32.mrf.mxu0
  %807 = vmatprep.mubr.bf16.mxu0 %v366
  %808 = vmatmul.mubr.bf16.gmra.mxu0 %v365
  %v809 = vpop.f32.mrf.mxu0
  %v810 = vadd.f32 0.0, %v809
  %v811 = vpop.f32.mrf.mxu0
  %v812 = vpop.f32.mrf.mxu0
  %v813 = vadd.f32 0.0, %v812
  %v814 = vpop.f32.mrf.mxu0
  %815 = vdwg.mxu0
  %v816 = vpack.c.bf16 %v565, %v562
  %v817 = vpack.c.bf16 %v573, %v570
  %v818 = vpack.c.bf16 %v581, %v578
  %v819 = vpack.c.bf16 %v589, %v586
  %v820 = vpack.c.bf16 %v597, %v594
  %v821 = vpack.c.bf16 %v605, %v602
  %v822 = vpack.c.bf16 %v613, %v610
  %v823 = vpack.c.bf16 %v621, %v618
  %v824 = vpack.c.bf16 %v629, %v626
  %v825 = vpack.c.bf16 %v637, %v634
  %v826 = vpack.c.bf16 %v645, %v642
  %v827 = vpack.c.bf16 %v653, %v650
  %v828 = vpack.c.bf16 %v661, %v658
  %v829 = vpack.c.bf16 %v669, %v666
  %v830 = vpack.c.bf16 %v677, %v674
  %v831 = vpack.c.bf16 %v685, %v682
  %v832 = vpack.c.bf16 %v693, %v690
  %v833 = vpack.c.bf16 %v701, %v698
  %v834 = vpack.c.bf16 %v709, %v706
  %v835 = vpack.c.bf16 %v717, %v714
  %v836 = vpack.c.bf16 %v725, %v722
  %v837 = vpack.c.bf16 %v733, %v730
  %v838 = vpack.c.bf16 %v741, %v738
  %v839 = vpack.c.bf16 %v749, %v746
  %v840 = vpack.c.bf16 %v757, %v754
  %v841 = vpack.c.bf16 %v765, %v762
  %v842 = vpack.c.bf16 %v773, %v770
  %v843 = vpack.c.bf16 %v781, %v778
  %v844 = vpack.c.bf16 %v789, %v786
  %v845 = vpack.c.bf16 %v797, %v794
  %v846 = vpack.c.bf16 %v805, %v802
  %v847 = vpack.c.bf16 %v813, %v810
  %v880 = vunpack.c.l.b16 %v816
  %v881 = vunpack.c.h.b16 %v816
  %v882 = vunpack.c.l.b16 %v817
  %v883 = vunpack.c.h.b16 %v817
  %v884 = vunpack.c.l.b16 %v818
  %v885 = vunpack.c.h.b16 %v818
  %v886 = vunpack.c.l.b16 %v819
  %v887 = vunpack.c.h.b16 %v819
  %v888 = vunpack.c.l.b16 %v820
  %v889 = vunpack.c.h.b16 %v820
  %v890 = vunpack.c.l.b16 %v821
  %v891 = vunpack.c.h.b16 %v821
  %v892 = vunpack.c.l.b16 %v822
  %v893 = vunpack.c.h.b16 %v822
  %v894 = vunpack.c.l.b16 %v823
  %v895 = vunpack.c.h.b16 %v823
  %v896 = vunpack.c.l.b16 %v824
  %v897 = vunpack.c.h.b16 %v824
  %v898 = vunpack.c.l.b16 %v825
  %v899 = vunpack.c.h.b16 %v825
  %v900 = vunpack.c.l.b16 %v826
  %v901 = vunpack.c.h.b16 %v826
  %v902 = vunpack.c.l.b16 %v827
  %v903 = vunpack.c.h.b16 %v827
  %v904 = vunpack.c.l.b16 %v828
  %v905 = vunpack.c.h.b16 %v828
  %v906 = vunpack.c.l.b16 %v829
  %v907 = vunpack.c.h.b16 %v829
  %v908 = vunpack.c.l.b16 %v830
  %v909 = vunpack.c.h.b16 %v830
  %v910 = vunpack.c.l.b16 %v831
  %v911 = vunpack.c.h.b16 %v831
  %v912 = vunpack.c.l.b16 %v832
  %v913 = vunpack.c.h.b16 %v832
  %v914 = vunpack.c.l.b16 %v833
  %v915 = vunpack.c.h.b16 %v833
  %v916 = vunpack.c.l.b16 %v834
  %v917 = vunpack.c.h.b16 %v834
  %v918 = vunpack.c.l.b16 %v835
  %v919 = vunpack.c.h.b16 %v835
  %v920 = vunpack.c.l.b16 %v836
  %v921 = vunpack.c.h.b16 %v836
  %v922 = vunpack.c.l.b16 %v837
  %v923 = vunpack.c.h.b16 %v837
  %v924 = vunpack.c.l.b16 %v838
  %v925 = vunpack.c.h.b16 %v838
  %v926 = vunpack.c.l.b16 %v839
  %v927 = vunpack.c.h.b16 %v839
  %v928 = vunpack.c.l.b16 %v840
  %v929 = vunpack.c.h.b16 %v840
  %v930 = vunpack.c.l.b16 %v841
  %v931 = vunpack.c.h.b16 %v841
  %v932 = vunpack.c.l.b16 %v842
  %v933 = vunpack.c.h.b16 %v842
  %v934 = vunpack.c.l.b16 %v843
  %v935 = vunpack.c.h.b16 %v843
  %v936 = vunpack.c.l.b16 %v844
  %v937 = vunpack.c.h.b16 %v844
  %v938 = vunpack.c.l.b16 %v845
  %v939 = vunpack.c.h.b16 %v845
  %v940 = vunpack.c.l.b16 %v846
  %v941 = vunpack.c.h.b16 %v846
  %v942 = vunpack.c.l.b16 %v847
  %v943 = vunpack.c.h.b16 %v847
  %v944 = vpack.c.b16 %v880, %v880
  %v945 = vpack.c.b16 %v881, %v881
  %v946 = vpack.c.b16 %v882, %v882
  %v947 = vpack.c.b16 %v883, %v883
  %v948 = vpack.c.b16 %v884, %v884
  %v949 = vpack.c.b16 %v885, %v885
  %v950 = vpack.c.b16 %v886, %v886
  %v951 = vpack.c.b16 %v887, %v887
  %v952 = vpack.c.b16 %v888, %v888
  %v953 = vpack.c.b16 %v889, %v889
  %v954 = vpack.c.b16 %v890, %v890
  %v955 = vpack.c.b16 %v891, %v891
  %v956 = vpack.c.b16 %v892, %v892
  %v957 = vpack.c.b16 %v893, %v893
  %v958 = vpack.c.b16 %v894, %v894
  %v959 = vpack.c.b16 %v895, %v895
  %v960 = vpack.c.b16 %v896, %v896
  %v961 = vpack.c.b16 %v897, %v897
  %v962 = vpack.c.b16 %v898, %v898
  %v963 = vpack.c.b16 %v899, %v899
  %v964 = vpack.c.b16 %v900, %v900
  %v965 = vpack.c.b16 %v901, %v901
  %v966 = vpack.c.b16 %v902, %v902
  %v967 = vpack.c.b16 %v903, %v903
  %v968 = vpack.c.b16 %v904, %v904
  %v969 = vpack.c.b16 %v905, %v905
  %v970 = vpack.c.b16 %v906, %v906
  %v971 = vpack.c.b16 %v907, %v907
  %v972 = vpack.c.b16 %v908, %v908
  %v973 = vpack.c.b16 %v909, %v909
  %v974 = vpack.c.b16 %v910, %v910
  %v975 = vpack.c.b16 %v911, %v911
  %v976 = vpack.c.b16 %v912, %v912
  %v977 = vpack.c.b16 %v913, %v913
  %v978 = vpack.c.b16 %v914, %v914
  %v979 = vpack.c.b16 %v915, %v915
  %v980 = vpack.c.b16 %v916, %v916
  %v981 = vpack.c.b16 %v917, %v917
  %v982 = vpack.c.b16 %v918, %v918
  %v983 = vpack.c.b16 %v919, %v919
  %v984 = vpack.c.b16 %v920, %v920
  %v985 = vpack.c.b16 %v921, %v921
  %v986 = vpack.c.b16 %v922, %v922
  %v987 = vpack.c.b16 %v923, %v923
  %v988 = vpack.c.b16 %v924, %v924
  %v989 = vpack.c.b16 %v925, %v925
  %v990 = vpack.c.b16 %v926, %v926
  %v991 = vpack.c.b16 %v927, %v927
  %v992 = vpack.c.b16 %v928, %v928
  %v993 = vpack.c.b16 %v929, %v929
  %v994 = vpack.c.b16 %v930, %v930
  %v995 = vpack.c.b16 %v931, %v931
  %v996 = vpack.c.b16 %v932, %v932
  %v997 = vpack.c.b16 %v933, %v933
  %v998 = vpack.c.b16 %v934, %v934
  %v999 = vpack.c.b16 %v935, %v935
  %v1000 = vpack.c.b16 %v936, %v936
  %v1001 = vpack.c.b16 %v937, %v937
  %v1002 = vpack.c.b16 %v938, %v938
  %v1003 = vpack.c.b16 %v939, %v939
  %v1004 = vpack.c.b16 %v940, %v940
  %v1005 = vpack.c.b16 %v941, %v941
  %v1006 = vpack.c.b16 %v942, %v942
  %v1007 = vpack.c.b16 %v943, %v943
  %1072 = vst [vmem:[%s2] sm:$0xf] %v944
  %1073 = vst [vmem:[%s2 + $0x4] sm:$0xf] %v945
  %1074 = vst [vmem:[%s2 + $0x8] sm:$0xf] %v946
  %1075 = vst [vmem:[%s2 + $0xc] sm:$0xf] %v947
  %1076 = vst [vmem:[%s2 + $0x10] sm:$0xf] %v948
  %1077 = vst [vmem:[%s2 + $0x14] sm:$0xf] %v949
  %1078 = vst [vmem:[%s2 + $0x18] sm:$0xf] %v950
  %1079 = vst [vmem:[%s2 + $0x1c] sm:$0xf] %v951
  %1080 = vst [vmem:[%s2 + $0x20] sm:$0xf] %v952
  %1081 = vst [vmem:[%s2 + $0x24] sm:$0xf] %v953
  %1082 = vst [vmem:[%s2 + $0x28] sm:$0xf] %v954
  %1083 = vst [vmem:[%s2 + $0x2c] sm:$0xf] %v955
  %1084 = vst [vmem:[%s2 + $0x30] sm:$0xf] %v956
  %1085 = vst [vmem:[%s2 + $0x34] sm:$0xf] %v957
  %1086 = vst [vmem:[%s2 + $0x38] sm:$0xf] %v958
  %1087 = vst [vmem:[%s2 + $0x3c] sm:$0xf] %v959
  %1088 = vst [vmem:[%s2 + $0x40] sm:$0xf] %v960
  %1089 = vst [vmem:[%s2 + $0x44] sm:$0xf] %v961
  %1090 = vst [vmem:[%s2 + $0x48] sm:$0xf] %v962
  %1091 = vst [vmem:[%s2 + $0x4c] sm:$0xf] %v963
  %1092 = vst [vmem:[%s2 + $0x50] sm:$0xf] %v964
  %1093 = vst [vmem:[%s2 + $0x54] sm:$0xf] %v965
  %1094 = vst [vmem:[%s2 + $0x58] sm:$0xf] %v966
  %1095 = vst [vmem:[%s2 + $0x5c] sm:$0xf] %v967
  %1096 = vst [vmem:[%s2 + $0x60] sm:$0xf] %v968
  %1097 = vst [vmem:[%s2 + $0x64] sm:$0xf] %v969
  %1098 = vst [vmem:[%s2 + $0x68] sm:$0xf] %v970
  %1099 = vst [vmem:[%s2 + $0x6c] sm:$0xf] %v971
  %1100 = vst [vmem:[%s2 + $0x70] sm:$0xf] %v972
  %1101 = vst [vmem:[%s2 + $0x74] sm:$0xf] %v973
  %1102 = vst [vmem:[%s2 + $0x78] sm:$0xf] %v974
  %1103 = vst [vmem:[%s2 + $0x7c] sm:$0xf] %v975
  %1104 = vst [vmem:[%s2 + $0x80] sm:$0xf] %v976
  %1105 = vst [vmem:[%s2 + $0x84] sm:$0xf] %v977
  %1106 = vst [vmem:[%s2 + $0x88] sm:$0xf] %v978
  %1107 = vst [vmem:[%s2 + $0x8c] sm:$0xf] %v979
  %1108 = vst [vmem:[%s2 + $0x90] sm:$0xf] %v980
  %1109 = vst [vmem:[%s2 + $0x94] sm:$0xf] %v981
  %1110 = vst [vmem:[%s2 + $0x98] sm:$0xf] %v982
  %1111 = vst [vmem:[%s2 + $0x9c] sm:$0xf] %v983
  %1112 = vst [vmem:[%s2 + $0xa0] sm:$0xf] %v984
  %1113 = vst [vmem:[%s2 + $0xa4] sm:$0xf] %v985
  %1114 = vst [vmem:[%s2 + $0xa8] sm:$0xf] %v986
  %1115 = vst [vmem:[%s2 + $0xac] sm:$0xf] %v987
  %1116 = vst [vmem:[%s2 + $0xb0] sm:$0xf] %v988
  %1117 = vst [vmem:[%s2 + $0xb4] sm:$0xf] %v989
  %1118 = vst [vmem:[%s2 + $0xb8] sm:$0xf] %v990
  %1119 = vst [vmem:[%s2 + $0xbc] sm:$0xf] %v991
  %1120 = vst [vmem:[%s2 + $0xc0] sm:$0xf] %v992
  %1121 = vst [vmem:[%s2 + $0xc4] sm:$0xf] %v993
  %1122 = vst [vmem:[%s2 + $0xc8] sm:$0xf] %v994
  %1123 = vst [vmem:[%s2 + $0xcc] sm:$0xf] %v995
  %1124 = vst [vmem:[%s2 + $0xd0] sm:$0xf] %v996
  %1125 = vst [vmem:[%s2 + $0xd4] sm:$0xf] %v997
  %1126 = vst [vmem:[%s2 + $0xd8] sm:$0xf] %v998
  %1127 = vst [vmem:[%s2 + $0xdc] sm:$0xf] %v999
  %1128 = vst [vmem:[%s2 + $0xe0] sm:$0xf] %v1000
  %1129 = vst [vmem:[%s2 + $0xe4] sm:$0xf] %v1001
  %1130 = vst [vmem:[%s2 + $0xe8] sm:$0xf] %v1002
  %1131 = vst [vmem:[%s2 + $0xec] sm:$0xf] %v1003
  %1132 = vst [vmem:[%s2 + $0xf0] sm:$0xf] %v1004
  %1133 = vst [vmem:[%s2 + $0xf4] sm:$0xf] %v1005
  %1134 = vst [vmem:[%s2 + $0xf8] sm:$0xf] %v1006
  %1135 = vst [vmem:[%s2 + $0xfc] sm:$0xf] %v1007
  %v1136 = vadd.f32 %v562, %v565
  %v1137 = vadd.f32 %v1136, %v570
  %v1138 = vadd.f32 %v1137, %v573
  %v1139 = vadd.f32 %v1138, %v578
  %v1140 = vadd.f32 %v1139, %v581
  %v1141 = vadd.f32 %v1140, %v586
  %v1142 = vadd.f32 %v1141, %v589
  %v1143 = vadd.f32 %v1142, %v594
  %v1144 = vadd.f32 %v1143, %v597
  %v1145 = vadd.f32 %v1144, %v602
  %v1146 = vadd.f32 %v1145, %v605
  %v1147 = vadd.f32 %v1146, %v610
  %v1148 = vadd.f32 %v1147, %v613
  %v1149 = vadd.f32 %v1148, %v618
  %v1150 = vadd.f32 %v1149, %v621
  %v1151 = vadd.f32 %v1150, %v626
  %v1152 = vadd.f32 %v1151, %v629
  %v1153 = vadd.f32 %v1152, %v634
  %v1154 = vadd.f32 %v1153, %v637
  %v1155 = vadd.f32 %v1154, %v642
  %v1156 = vadd.f32 %v1155, %v645
  %v1157 = vadd.f32 %v1156, %v650
  %v1158 = vadd.f32 %v1157, %v653
  %v1159 = vadd.f32 %v1158, %v658
  %v1160 = vadd.f32 %v1159, %v661
  %v1161 = vadd.f32 %v1160, %v666
  %v1162 = vadd.f32 %v1161, %v669
  %v1163 = vadd.f32 %v1162, %v674
  %v1164 = vadd.f32 %v1163, %v677
  %v1165 = vadd.f32 %v1164, %v682
  %v1166 = vadd.f32 %v1165, %v685
  %v1167 = vadd.f32 %v1166, %v690
  %v1168 = vadd.f32 %v1167, %v693
  %v1169 = vadd.f32 %v1168, %v698
  %v1170 = vadd.f32 %v1169, %v701
  %v1171 = vadd.f32 %v1170, %v706
  %v1172 = vadd.f32 %v1171, %v709
  %v1173 = vadd.f32 %v1172, %v714
  %v1174 = vadd.f32 %v1173, %v717
  %v1175 = vadd.f32 %v1174, %v722
  %v1176 = vadd.f32 %v1175, %v725
  %v1177 = vadd.f32 %v1176, %v730
  %v1178 = vadd.f32 %v1177, %v733
  %v1179 = vadd.f32 %v1178, %v738
  %v1180 = vadd.f32 %v1179, %v741
  %v1181 = vadd.f32 %v1180, %v746
  %v1182 = vadd.f32 %v1181, %v749
  %v1183 = vadd.f32 %v1182, %v754
  %v1184 = vadd.f32 %v1183, %v757
  %v1185 = vadd.f32 %v1184, %v762
  %v1186 = vadd.f32 %v1185, %v765
  %v1187 = vadd.f32 %v1186, %v770
  %v1188 = vadd.f32 %v1187, %v773
  %v1189 = vadd.f32 %v1188, %v778
  %v1190 = vadd.f32 %v1189, %v781
  %v1191 = vadd.f32 %v1190, %v786
  %v1192 = vadd.f32 %v1191, %v789
  %v1193 = vadd.f32 %v1192, %v794
  %v1194 = vadd.f32 %v1193, %v797
  %v1195 = vadd.f32 %v1194, %v802
  %v1196 = vadd.f32 %v1195, %v805
  %v1197 = vadd.f32 %v1196, %v810
  %v1198 = vadd.f32 %v1197, %v813
  %v1199 = vrot.slane %v1198, 4
  %v1200 = vadd.f32 %v1198, %v1199
  %v1201 = vrot.slane %v1200, 2
  %v1202 = vadd.f32 %v1200, %v1201
  %v1203 = vrot.slane %v1202, 1
  %v1204 = vadd.f32 %v1202, %v1203
  %1205 = vst [vmem:[%s3] sm:$0x1] %v1204
  %v1206 = vmul.f32 %v562, %v562
  %v1207 = vmul.f32 %v565, %v565
  %v1208 = vmul.f32 %v570, %v570
  %v1209 = vmul.f32 %v573, %v573
  %v1210 = vmul.f32 %v578, %v578
  %v1211 = vmul.f32 %v581, %v581
  %v1212 = vmul.f32 %v586, %v586
  %v1213 = vmul.f32 %v589, %v589
  %v1214 = vmul.f32 %v594, %v594
  %v1215 = vmul.f32 %v597, %v597
  %v1216 = vmul.f32 %v602, %v602
  %v1217 = vmul.f32 %v605, %v605
  %v1218 = vmul.f32 %v610, %v610
  %v1219 = vmul.f32 %v613, %v613
  %v1220 = vmul.f32 %v618, %v618
  %v1221 = vmul.f32 %v621, %v621
  %v1222 = vmul.f32 %v626, %v626
  %v1223 = vmul.f32 %v629, %v629
  %v1224 = vmul.f32 %v634, %v634
  %v1225 = vmul.f32 %v637, %v637
  %v1226 = vmul.f32 %v642, %v642
  %v1227 = vmul.f32 %v645, %v645
  %v1228 = vmul.f32 %v650, %v650
  %v1229 = vmul.f32 %v653, %v653
  %v1230 = vmul.f32 %v658, %v658
  %v1231 = vmul.f32 %v661, %v661
  %v1232 = vmul.f32 %v666, %v666
  %v1233 = vmul.f32 %v669, %v669
  %v1234 = vmul.f32 %v674, %v674
  %v1235 = vmul.f32 %v677, %v677
  %v1236 = vmul.f32 %v682, %v682
  %v1237 = vmul.f32 %v685, %v685
  %v1238 = vmul.f32 %v690, %v690
  %v1239 = vmul.f32 %v693, %v693
  %v1240 = vmul.f32 %v698, %v698
  %v1241 = vmul.f32 %v701, %v701
  %v1242 = vmul.f32 %v706, %v706
  %v1243 = vmul.f32 %v709, %v709
  %v1244 = vmul.f32 %v714, %v714
  %v1245 = vmul.f32 %v717, %v717
  %v1246 = vmul.f32 %v722, %v722
  %v1247 = vmul.f32 %v725, %v725
  %v1248 = vmul.f32 %v730, %v730
  %v1249 = vmul.f32 %v733, %v733
  %v1250 = vmul.f32 %v738, %v738
  %v1251 = vmul.f32 %v741, %v741
  %v1252 = vmul.f32 %v746, %v746
  %v1253 = vmul.f32 %v749, %v749
  %v1254 = vmul.f32 %v754, %v754
  %v1255 = vmul.f32 %v757, %v757
  %v1256 = vmul.f32 %v762, %v762
  %v1257 = vmul.f32 %v765, %v765
  %v1258 = vmul.f32 %v770, %v770
  %v1259 = vmul.f32 %v773, %v773
  %v1260 = vmul.f32 %v778, %v778
  %v1261 = vmul.f32 %v781, %v781
  %v1262 = vmul.f32 %v786, %v786
  %v1263 = vmul.f32 %v789, %v789
  %v1264 = vmul.f32 %v794, %v794
  %v1265 = vmul.f32 %v797, %v797
  %v1266 = vmul.f32 %v802, %v802
  %v1267 = vmul.f32 %v805, %v805
  %v1268 = vmul.f32 %v810, %v810
  %v1269 = vmul.f32 %v813, %v813
  %v1270 = vadd.f32 %v1206, %v1207
  %v1271 = vadd.f32 %v1270, %v1208
  %v1272 = vadd.f32 %v1271, %v1209
  %v1273 = vadd.f32 %v1272, %v1210
  %v1274 = vadd.f32 %v1273, %v1211
  %v1275 = vadd.f32 %v1274, %v1212
  %v1276 = vadd.f32 %v1275, %v1213
  %v1277 = vadd.f32 %v1276, %v1214
  %v1278 = vadd.f32 %v1277, %v1215
  %v1279 = vadd.f32 %v1278, %v1216
  %v1280 = vadd.f32 %v1279, %v1217
  %v1281 = vadd.f32 %v1280, %v1218
  %v1282 = vadd.f32 %v1281, %v1219
  %v1283 = vadd.f32 %v1282, %v1220
  %v1284 = vadd.f32 %v1283, %v1221
  %v1285 = vadd.f32 %v1284, %v1222
  %v1286 = vadd.f32 %v1285, %v1223
  %v1287 = vadd.f32 %v1286, %v1224
  %v1288 = vadd.f32 %v1287, %v1225
  %v1289 = vadd.f32 %v1288, %v1226
  %v1290 = vadd.f32 %v1289, %v1227
  %v1291 = vadd.f32 %v1290, %v1228
  %v1292 = vadd.f32 %v1291, %v1229
  %v1293 = vadd.f32 %v1292, %v1230
  %v1294 = vadd.f32 %v1293, %v1231
  %v1295 = vadd.f32 %v1294, %v1232
  %v1296 = vadd.f32 %v1295, %v1233
  %v1297 = vadd.f32 %v1296, %v1234
  %v1298 = vadd.f32 %v1297, %v1235
  %v1299 = vadd.f32 %v1298, %v1236
  %v1300 = vadd.f32 %v1299, %v1237
  %v1301 = vadd.f32 %v1300, %v1238
  %v1302 = vadd.f32 %v1301, %v1239
  %v1303 = vadd.f32 %v1302, %v1240
  %v1304 = vadd.f32 %v1303, %v1241
  %v1305 = vadd.f32 %v1304, %v1242
  %v1306 = vadd.f32 %v1305, %v1243
  %v1307 = vadd.f32 %v1306, %v1244
  %v1308 = vadd.f32 %v1307, %v1245
  %v1309 = vadd.f32 %v1308, %v1246
  %v1310 = vadd.f32 %v1309, %v1247
  %v1311 = vadd.f32 %v1310, %v1248
  %v1312 = vadd.f32 %v1311, %v1249
  %v1313 = vadd.f32 %v1312, %v1250
  %v1314 = vadd.f32 %v1313, %v1251
  %v1315 = vadd.f32 %v1314, %v1252
  %v1316 = vadd.f32 %v1315, %v1253
  %v1317 = vadd.f32 %v1316, %v1254
  %v1318 = vadd.f32 %v1317, %v1255
  %v1319 = vadd.f32 %v1318, %v1256
  %v1320 = vadd.f32 %v1319, %v1257
  %v1321 = vadd.f32 %v1320, %v1258
  %v1322 = vadd.f32 %v1321, %v1259
  %v1323 = vadd.f32 %v1322, %v1260
  %v1324 = vadd.f32 %v1323, %v1261
  %v1325 = vadd.f32 %v1324, %v1262
  %v1326 = vadd.f32 %v1325, %v1263
  %v1327 = vadd.f32 %v1326, %v1264
  %v1328 = vadd.f32 %v1327, %v1265
  %v1329 = vadd.f32 %v1328, %v1266
  %v1330 = vadd.f32 %v1329, %v1267
  %v1331 = vadd.f32 %v1330, %v1268
  %v1332 = vadd.f32 %v1331, %v1269
  %v1333 = vrot.slane %v1332, 4
  %v1334 = vadd.f32 %v1332, %v1333
  %v1335 = vrot.slane %v1334, 2
  %v1336 = vadd.f32 %v1334, %v1335
  %v1337 = vrot.slane %v1336, 1
  %v1338 = vadd.f32 %v1336, %v1337
  %1339 = vst [vmem:[%s4] sm:$0x1] %v1338
  // Predicated region
  $region10: #{_lambda_.2} parent=0 // pred_check
    _
  $region11: #{_lambda_.2} parent=0 // pred_check_branch
    %1341 = sbr.rel (0) target = $region13
  $region12: #{_lambda_.2} parent=0 // pred_region
    _
  $region13: #{_lambda_.2} parent=0 // pred_fallthru
    _
  // Predicated region
  $region14: #{_lambda_.2} parent=0 // pred_check
    _
  $region15: #{_lambda_.2} parent=0 // pred_check_branch
    %1343 = sbr.rel (0) target = $region17
  $region16: #{_lambda_.2} parent=0 // pred_region
    _
  $region17: #{_lambda_.2} parent=0 // pred_fallthru
    _
  // Predicated region
  $region18: #{_lambda_.2} parent=0 // pred_check
    _
  $region19: #{_lambda_.2} parent=0 // pred_check_branch
    %1345 = sbr.rel (0) target = $region21
  $region20: #{_lambda_.2} parent=0 // pred_region
    _
  $region21: #{_lambda_.2} parent=0 // pred_fallthru
    _
  // Predicated region
  $region22: #{_lambda_.2} parent=0 // pred_check
    _
  $region23: #{_lambda_.2} parent=0 // pred_check_branch
    %1347 = sbr.rel (0) target = $region25
  $region24: #{_lambda_.2} parent=0 // pred_region
    _
  $region25: #{_lambda_.2} parent=0 // pred_fallthru
    _
  // Predicated region
  $region26: #{_lambda_.2} parent=0 // pred_check
    _
  $region27: #{_lambda_.2} parent=0 // pred_check_branch
    %1349 = sbr.rel (0) target = $region29
  $region28: #{_lambda_.2} parent=0 // pred_region
    _
  $region29: #{_lambda_.2} parent=0 // pred_fallthru
    _
  // Predicated region
  $region30: #{_lambda_.2} parent=0 // pred_check
    _
  $region31: #{_lambda_.2} parent=0 // pred_check_branch
    %1351 = sbr.rel (0) target = $region33
  $region32: #{_lambda_.2} parent=0 // pred_region
    _
  $region33: #{_lambda_.2} parent=0 // pred_fallthru
    _

// kernel: _lambda_.3
$region0: #{_lambda_.3}
  #allocation0 [shape = 'u32[]', space=smem, size = 0x4, offset = 0x4, fixed_abs, tag = 'smem constant byte address 0x4 - core index']
  #allocation1 [shape = 'u32[144,128]{1,0:T(1,128)}', space=vmem, size = 0x12000, scoped, tag = 'internal scratch']
  %s0 = inlined_call_operand.vmem [shape: bf16[2,2,128,128], index: 0, kind: input, shape index: {}]
  %s1 = inlined_call_operand.vmem [shape: f32[1,128], index: 1, kind: input, shape index: {}]
  %s2 = inlined_call_operand.vmem [shape: f32[1,128], index: 2, kind: input, shape index: {}]
  %s3 = inlined_call_operand.vmem [shape: bf16[128,128], index: 3, kind: input, shape index: {}]
  %s4 = inlined_call_operand.vmem [shape: f32[1,128], index: 4, kind: input, shape index: {}]
  %s5 = inlined_call_operand.hbm [shape: f32[1,2,128], index: 5, kind: output, shape index: {}]
  %s6 = sld [smem:[#allocation0]]
  $region30: #{_lambda_.3} parent=0
    _
  %s8 = ssub.s32 1, %s6
  %s9 = scalar_select 0, %s8, %s6
  $region1: #{_lambda_.3} parent=0
    #allocation2 [shape = 'u8[1024]{0}', space=vmem, size = 0x400, scoped, tag = 'output window, operand 0, single buffered']
    #allocation3 [shape = 's32[1]{0}', space=sflag, size = 0x4, scoped, tag = 'scoped memory for _lambda_.3']
    %10 = vsyncpa [#allocation3], 0
    // Predicated region
    $region2: #{_lambda_.3} parent=1 // pred_check
      _
    $region3: #{_lambda_.3} parent=1 // pred_check_branch
      %12 = sbr.rel (0) target = $region5
    $region4: #{_lambda_.3} parent=1 // pred_region
      _
    $region5: #{_lambda_.3} parent=1 // pred_fallthru
      _
    // Predicated region
    $region6: #{_lambda_.3} parent=1 // pred_check
      _
    $region7: #{_lambda_.3} parent=1 // pred_check_branch
      %14 = sbr.rel (0) target = $region9
    $region8: #{_lambda_.3} parent=1 // pred_region
      _
    $region9: #{_lambda_.3} parent=1 // pred_fallthru
      _
    // Predicated region
    $region10: #{_lambda_.3} parent=1 // pred_check
      _
    $region11: #{_lambda_.3} parent=1 // pred_check_branch
      %16 = sbr.rel (0) target = $region13
    $region12: #{_lambda_.3} parent=1 // pred_region
      _
    $region13: #{_lambda_.3} parent=1 // pred_fallthru
      _
    // Predicated region
    $region14: #{_lambda_.3} parent=1 // pred_check
      _
    $region15: #{_lambda_.3} parent=1 // pred_check_branch
      %18 = sbr.rel (0) target = $region17
    $region16: #{_lambda_.3} parent=1 // pred_region
      _
    $region17: #{_lambda_.3} parent=1 // pred_fallthru
      _
    // Predicated region
    $region18: #{_lambda_.3} parent=1 // pred_check
      _
    $region19: #{_lambda_.3} parent=1 // pred_check_branch
      %20 = sbr.rel (0) target = $region21
    $region20: #{_lambda_.3} parent=1 // pred_region
      _
    $region21: #{_lambda_.3} parent=1 // pred_fallthru
      _
    %v22 = vld [vmem:[%s1] sm:$0x1]
    %v23 = vld [vmem:[%s2] sm:$0x1]
    %v24 = vld [vmem:[%s0] sm:$0xf]
    %v25 = vld [vmem:[%s0 + $0x4] sm:$0xf]
    %v26 = vld [vmem:[%s0 + $0x8] sm:$0xf]
    %v27 = vld [vmem:[%s0 + $0xc] sm:$0xf]
    %v28 = vld [vmem:[%s0 + $0x10] sm:$0xf]
    %v29 = vld [vmem:[%s0 + $0x14] sm:$0xf]
    %v30 = vld [vmem:[%s0 + $0x18] sm:$0xf]
    %v31 = vld [vmem:[%s0 + $0x1c] sm:$0xf]
    %v32 = vld [vmem:[%s0 + $0x20] sm:$0xf]
    %v33 = vld [vmem:[%s0 + $0x24] sm:$0xf]
    %v34 = vld [vmem:[%s0 + $0x28] sm:$0xf]
    %v35 = vld [vmem:[%s0 + $0x2c] sm:$0xf]
    %v36 = vld [vmem:[%s0 + $0x30] sm:$0xf]
    %v37 = vld [vmem:[%s0 + $0x34] sm:$0xf]
    %v38 = vld [vmem:[%s0 + $0x38] sm:$0xf]
    %v39 = vld [vmem:[%s0 + $0x3c] sm:$0xf]
    %v40 = vld [vmem:[%s0 + $0x40] sm:$0xf]
    %v41 = vld [vmem:[%s0 + $0x44] sm:$0xf]
    %v42 = vld [vmem:[%s0 + $0x48] sm:$0xf]
    %v43 = vld [vmem:[%s0 + $0x4c] sm:$0xf]
    %v44 = vld [vmem:[%s0 + $0x50] sm:$0xf]
    %v45 = vld [vmem:[%s0 + $0x54] sm:$0xf]
    %v46 = vld [vmem:[%s0 + $0x58] sm:$0xf]
    %v47 = vld [vmem:[%s0 + $0x5c] sm:$0xf]
    %v48 = vld [vmem:[%s0 + $0x60] sm:$0xf]
    %v49 = vld [vmem:[%s0 + $0x64] sm:$0xf]
    %v50 = vld [vmem:[%s0 + $0x68] sm:$0xf]
    %v51 = vld [vmem:[%s0 + $0x6c] sm:$0xf]
    %v52 = vld [vmem:[%s0 + $0x70] sm:$0xf]
    %v53 = vld [vmem:[%s0 + $0x74] sm:$0xf]
    %v54 = vld [vmem:[%s0 + $0x78] sm:$0xf]
    %v55 = vld [vmem:[%s0 + $0x7c] sm:$0xf]
    %v56 = vld [vmem:[%s0 + $0x80] sm:$0xf]
    %v57 = vld [vmem:[%s0 + $0x84] sm:$0xf]
    %v58 = vld [vmem:[%s0 + $0x88] sm:$0xf]
    %v59 = vld [vmem:[%s0 + $0x8c] sm:$0xf]
    %v60 = vld [vmem:[%s0 + $0x90] sm:$0xf]
    %v61 = vld [vmem:[%s0 + $0x94] sm:$0xf]
    %v62 = vld [vmem:[%s0 + $0x98] sm:$0xf]
    %v63 = vld [vmem:[%s0 + $0x9c] sm:$0xf]
    %v64 = vld [vmem:[%s0 + $0xa0] sm:$0xf]
    %v65 = vld [vmem:[%s0 + $0xa4] sm:$0xf]
    %v66 = vld [vmem:[%s0 + $0xa8] sm:$0xf]
    %v67 = vld [vmem:[%s0 + $0xac] sm:$0xf]
    %v68 = vld [vmem:[%s0 + $0xb0] sm:$0xf]
    %v69 = vld [vmem:[%s0 + $0xb4] sm:$0xf]
    %v70 = vld [vmem:[%s0 + $0xb8] sm:$0xf]
    %v71 = vld [vmem:[%s0 + $0xbc] sm:$0xf]
    %v72 = vld [vmem:[%s0 + $0xc0] sm:$0xf]
    %v73 = vld [vmem:[%s0 + $0xc4] sm:$0xf]
    %v74 = vld [vmem:[%s0 + $0xc8] sm:$0xf]
    %v75 = vld [vmem:[%s0 + $0xcc] sm:$0xf]
    %v76 = vld [vmem:[%s0 + $0xd0] sm:$0xf]
    %v77 = vld [vmem:[%s0 + $0xd4] sm:$0xf]
    %v78 = vld [vmem:[%s0 + $0xd8] sm:$0xf]
    %v79 = vld [vmem:[%s0 + $0xdc] sm:$0xf]
    %v80 = vld [vmem:[%s0 + $0xe0] sm:$0xf]
    %v81 = vld [vmem:[%s0 + $0xe4] sm:$0xf]
    %v82 = vld [vmem:[%s0 + $0xe8] sm:$0xf]
    %v83 = vld [vmem:[%s0 + $0xec] sm:$0xf]
    %v84 = vld [vmem:[%s0 + $0xf0] sm:$0xf]
    %v85 = vld [vmem:[%s0 + $0xf4] sm:$0xf]
    %v86 = vld [vmem:[%s0 + $0xf8] sm:$0xf]
    %v87 = vld [vmem:[%s0 + $0xfc] sm:$0xf]
    %v88 = vunpack.c.l.bf16 %v24
    %v89 = vunpack.c.l.bf16 %v25
    %v90 = vunpack.c.l.bf16 %v26
    %v91 = vunpack.c.l.bf16 %v27
    %v92 = vunpack.c.l.bf16 %v28
    %v93 = vunpack.c.l.bf16 %v29
    %v94 = vunpack.c.l.bf16 %v30
    %v95 = vunpack.c.l.bf16 %v31
    %v96 = vunpack.c.l.bf16 %v32
    %v97 = vunpack.c.l.bf16 %v33
    %v98 = vunpack.c.l.bf16 %v34
    %v99 = vunpack.c.l.bf16 %v35
    %v100 = vunpack.c.l.bf16 %v36
    %v101 = vunpack.c.l.bf16 %v37
    %v102 = vunpack.c.l.bf16 %v38
    %v103 = vunpack.c.l.bf16 %v39
    %v104 = vunpack.c.l.bf16 %v40
    %v105 = vunpack.c.l.bf16 %v41
    %v106 = vunpack.c.l.bf16 %v42
    %v107 = vunpack.c.l.bf16 %v43
    %v108 = vunpack.c.l.bf16 %v44
    %v109 = vunpack.c.l.bf16 %v45
    %v110 = vunpack.c.l.bf16 %v46
    %v111 = vunpack.c.l.bf16 %v47
    %v112 = vunpack.c.l.bf16 %v48
    %v113 = vunpack.c.l.bf16 %v49
    %v114 = vunpack.c.l.bf16 %v50
    %v115 = vunpack.c.l.bf16 %v51
    %v116 = vunpack.c.l.bf16 %v52
    %v117 = vunpack.c.l.bf16 %v53
    %v118 = vunpack.c.l.bf16 %v54
    %v119 = vunpack.c.l.bf16 %v55
    %v120 = vunpack.c.l.bf16 %v56
    %v121 = vunpack.c.l.bf16 %v57
    %v122 = vunpack.c.l.bf16 %v58
    %v123 = vunpack.c.l.bf16 %v59
    %v124 = vunpack.c.l.bf16 %v60
    %v125 = vunpack.c.l.bf16 %v61
    %v126 = vunpack.c.l.bf16 %v62
    %v127 = vunpack.c.l.bf16 %v63
    %v128 = vunpack.c.l.bf16 %v64
    %v129 = vunpack.c.l.bf16 %v65
    %v130 = vunpack.c.l.bf16 %v66
    %v131 = vunpack.c.l.bf16 %v67
    %v132 = vunpack.c.l.bf16 %v68
    %v133 = vunpack.c.l.bf16 %v69
    %v134 = vunpack.c.l.bf16 %v70
    %v135 = vunpack.c.l.bf16 %v71
    %v136 = vunpack.c.l.bf16 %v72
    %v137 = vunpack.c.l.bf16 %v73
    %v138 = vunpack.c.l.bf16 %v74
    %v139 = vunpack.c.l.bf16 %v75
    %v140 = vunpack.c.l.bf16 %v76
    %v141 = vunpack.c.l.bf16 %v77
    %v142 = vunpack.c.l.bf16 %v78
    %v143 = vunpack.c.l.bf16 %v79
    %v144 = vunpack.c.l.bf16 %v80
    %v145 = vunpack.c.l.bf16 %v81
    %v146 = vunpack.c.l.bf16 %v82
    %v147 = vunpack.c.l.bf16 %v83
    %v148 = vunpack.c.l.bf16 %v84
    %v149 = vunpack.c.l.bf16 %v85
    %v150 = vunpack.c.l.bf16 %v86
    %v151 = vunpack.c.l.bf16 %v87
    %v153 = vlaneseq
    %v154 = vshrl.u32 %v153, 7
    %v155 = vsub.s32 0, %v154
    %v156 = vrot.slane %v22, %v155
    %v158 = vmul.f32 %v88, %v156
    %v159 = vmul.f32 %v89, %v156
    %v160 = vmul.f32 %v90, %v156
    %v161 = vmul.f32 %v91, %v156
    %v162 = vmul.f32 %v92, %v156
    %v163 = vmul.f32 %v93, %v156
    %v164 = vmul.f32 %v94, %v156
    %v165 = vmul.f32 %v95, %v156
    %v166 = vmul.f32 %v96, %v156
    %v167 = vmul.f32 %v97, %v156
    %v168 = vmul.f32 %v98, %v156
    %v169 = vmul.f32 %v99, %v156
    %v170 = vmul.f32 %v100, %v156
    %v171 = vmul.f32 %v101, %v156
    %v172 = vmul.f32 %v102, %v156
    %v173 = vmul.f32 %v103, %v156
    %v174 = vmul.f32 %v104, %v156
    %v175 = vmul.f32 %v105, %v156
    %v176 = vmul.f32 %v106, %v156
    %v177 = vmul.f32 %v107, %v156
    %v178 = vmul.f32 %v108, %v156
    %v179 = vmul.f32 %v109, %v156
    %v180 = vmul.f32 %v110, %v156
    %v181 = vmul.f32 %v111, %v156
    %v182 = vmul.f32 %v112, %v156
    %v183 = vmul.f32 %v113, %v156
    %v184 = vmul.f32 %v114, %v156
    %v185 = vmul.f32 %v115, %v156
    %v186 = vmul.f32 %v116, %v156
    %v187 = vmul.f32 %v117, %v156
    %v188 = vmul.f32 %v118, %v156
    %v189 = vmul.f32 %v119, %v156
    %v190 = vmul.f32 %v120, %v156
    %v191 = vmul.f32 %v121, %v156
    %v192 = vmul.f32 %v122, %v156
    %v193 = vmul.f32 %v123, %v156
    %v194 = vmul.f32 %v124, %v156
    %v195 = vmul.f32 %v125, %v156
    %v196 = vmul.f32 %v126, %v156
    %v197 = vmul.f32 %v127, %v156
    %v198 = vmul.f32 %v128, %v156
    %v199 = vmul.f32 %v129, %v156
    %v200 = vmul.f32 %v130, %v156
    %v201 = vmul.f32 %v131, %v156
    %v202 = vmul.f32 %v132, %v156
    %v203 = vmul.f32 %v133, %v156
    %v204 = vmul.f32 %v134, %v156
    %v205 = vmul.f32 %v135, %v156
    %v206 = vmul.f32 %v136, %v156
    %v207 = vmul.f32 %v137, %v156
    %v208 = vmul.f32 %v138, %v156
    %v209 = vmul.f32 %v139, %v156
    %v210 = vmul.f32 %v140, %v156
    %v211 = vmul.f32 %v141, %v156
    %v212 = vmul.f32 %v142, %v156
    %v213 = vmul.f32 %v143, %v156
    %v214 = vmul.f32 %v144, %v156
    %v215 = vmul.f32 %v145, %v156
    %v216 = vmul.f32 %v146, %v156
    %v217 = vmul.f32 %v147, %v156
    %v218 = vmul.f32 %v148, %v156
    %v219 = vmul.f32 %v149, %v156
    %v220 = vmul.f32 %v150, %v156
    %v221 = vmul.f32 %v151, %v156
    %v223 = vlaneseq
    %v224 = vshrl.u32 %v223, 7
    %v225 = vsub.s32 0, %v224
    %v226 = vrot.slane %v23, %v225
    %v228 = vadd.f32 %v158, %v226
    %v229 = vadd.f32 %v159, %v226
    %v230 = vadd.f32 %v160, %v226
    %v231 = vadd.f32 %v161, %v226
    %v232 = vadd.f32 %v162, %v226
    %v233 = vadd.f32 %v163, %v226
    %v234 = vadd.f32 %v164, %v226
    %v235 = vadd.f32 %v165, %v226
    %v236 = vadd.f32 %v166, %v226
    %v237 = vadd.f32 %v167, %v226
    %v238 = vadd.f32 %v168, %v226
    %v239 = vadd.f32 %v169, %v226
    %v240 = vadd.f32 %v170, %v226
    %v241 = vadd.f32 %v171, %v226
    %v242 = vadd.f32 %v172, %v226
    %v243 = vadd.f32 %v173, %v226
    %v244 = vadd.f32 %v174, %v226
    %v245 = vadd.f32 %v175, %v226
    %v246 = vadd.f32 %v176, %v226
    %v247 = vadd.f32 %v177, %v226
    %v248 = vadd.f32 %v178, %v226
    %v249 = vadd.f32 %v179, %v226
    %v250 = vadd.f32 %v180, %v226
    %v251 = vadd.f32 %v181, %v226
    %v252 = vadd.f32 %v182, %v226
    %v253 = vadd.f32 %v183, %v226
    %v254 = vadd.f32 %v184, %v226
    %v255 = vadd.f32 %v185, %v226
    %v256 = vadd.f32 %v186, %v226
    %v257 = vadd.f32 %v187, %v226
    %v258 = vadd.f32 %v188, %v226
    %v259 = vadd.f32 %v189, %v226
    %v260 = vadd.f32 %v190, %v226
    %v261 = vadd.f32 %v191, %v226
    %v262 = vadd.f32 %v192, %v226
    %v263 = vadd.f32 %v193, %v226
    %v264 = vadd.f32 %v194, %v226
    %v265 = vadd.f32 %v195, %v226
    %v266 = vadd.f32 %v196, %v226
    %v267 = vadd.f32 %v197, %v226
    %v268 = vadd.f32 %v198, %v226
    %v269 = vadd.f32 %v199, %v226
    %v270 = vadd.f32 %v200, %v226
    %v271 = vadd.f32 %v201, %v226
    %v272 = vadd.f32 %v202, %v226
    %v273 = vadd.f32 %v203, %v226
    %v274 = vadd.f32 %v204, %v226
    %v275 = vadd.f32 %v205, %v226
    %v276 = vadd.f32 %v206, %v226
    %v277 = vadd.f32 %v207, %v226
    %v278 = vadd.f32 %v208, %v226
    %v279 = vadd.f32 %v209, %v226
    %v280 = vadd.f32 %v210, %v226
    %v281 = vadd.f32 %v211, %v226
    %v282 = vadd.f32 %v212, %v226
    %v283 = vadd.f32 %v213, %v226
    %v284 = vadd.f32 %v214, %v226
    %v285 = vadd.f32 %v215, %v226
    %v286 = vadd.f32 %v216, %v226
    %v287 = vadd.f32 %v217, %v226
    %v288 = vadd.f32 %v218, %v226
    %v289 = vadd.f32 %v219, %v226
    %v290 = vadd.f32 %v220, %v226
    %v291 = vadd.f32 %v221, %v226
    %v292 = vmax.f32 %v228, 0.0
    %v293 = vmax.f32 %v229, 0.0
    %v294 = vmax.f32 %v230, 0.0
    %v295 = vmax.f32 %v231, 0.0
    %v296 = vmax.f32 %v232, 0.0
    %v297 = vmax.f32 %v233, 0.0
    %v298 = vmax.f32 %v234, 0.0
    %v299 = vmax.f32 %v235, 0.0
    %v300 = vmax.f32 %v236, 0.0
    %v301 = vmax.f32 %v237, 0.0
    %v302 = vmax.f32 %v238, 0.0
    %v303 = vmax.f32 %v239, 0.0
    %v304 = vmax.f32 %v240, 0.0
    %v305 = vmax.f32 %v241, 0.0
    %v306 = vmax.f32 %v242, 0.0
    %v307 = vmax.f32 %v243, 0.0
    %v308 = vmax.f32 %v244, 0.0
    %v309 = vmax.f32 %v245, 0.0
    %v310 = vmax.f32 %v246, 0.0
    %v311 = vmax.f32 %v247, 0.0
    %v312 = vmax.f32 %v248, 0.0
    %v313 = vmax.f32 %v249, 0.0
    %v314 = vmax.f32 %v250, 0.0
    %v315 = vmax.f32 %v251, 0.0
    %v316 = vmax.f32 %v252, 0.0
    %v317 = vmax.f32 %v253, 0.0
    %v318 = vmax.f32 %v254, 0.0
    %v319 = vmax.f32 %v255, 0.0
    %v320 = vmax.f32 %v256, 0.0
    %v321 = vmax.f32 %v257, 0.0
    %v322 = vmax.f32 %v258, 0.0
    %v323 = vmax.f32 %v259, 0.0
    %v324 = vmax.f32 %v260, 0.0
    %v325 = vmax.f32 %v261, 0.0
    %v326 = vmax.f32 %v262, 0.0
    %v327 = vmax.f32 %v263, 0.0
    %v328 = vmax.f32 %v264, 0.0
    %v329 = vmax.f32 %v265, 0.0
    %v330 = vmax.f32 %v266, 0.0
    %v331 = vmax.f32 %v267, 0.0
    %v332 = vmax.f32 %v268, 0.0
    %v333 = vmax.f32 %v269, 0.0
    %v334 = vmax.f32 %v270, 0.0
    %v335 = vmax.f32 %v271, 0.0
    %v336 = vmax.f32 %v272, 0.0
    %v337 = vmax.f32 %v273, 0.0
    %v338 = vmax.f32 %v274, 0.0
    %v339 = vmax.f32 %v275, 0.0
    %v340 = vmax.f32 %v276, 0.0
    %v341 = vmax.f32 %v277, 0.0
    %v342 = vmax.f32 %v278, 0.0
    %v343 = vmax.f32 %v279, 0.0
    %v344 = vmax.f32 %v280, 0.0
    %v345 = vmax.f32 %v281, 0.0
    %v346 = vmax.f32 %v282, 0.0
    %v347 = vmax.f32 %v283, 0.0
    %v348 = vmax.f32 %v284, 0.0
    %v349 = vmax.f32 %v285, 0.0
    %v350 = vmax.f32 %v286, 0.0
    %v351 = vmax.f32 %v287, 0.0
    %v352 = vmax.f32 %v288, 0.0
    %v353 = vmax.f32 %v289, 0.0
    %v354 = vmax.f32 %v290, 0.0
    %v355 = vmax.f32 %v291, 0.0
    %v356 = vmax.f32 %v292, %v293
    %v357 = vmax.f32 %v294, %v295
    %v358 = vmax.f32 %v296, %v297
    %v359 = vmax.f32 %v298, %v299
    %v360 = vmax.f32 %v300, %v301
    %v361 = vmax.f32 %v302, %v303
    %v362 = vmax.f32 %v304, %v305
    %v363 = vmax.f32 %v306, %v307
    %v364 = vmax.f32 %v308, %v309
    %v365 = vmax.f32 %v310, %v311
    %v366 = vmax.f32 %v312, %v313
    %v367 = vmax.f32 %v314, %v315
    %v368 = vmax.f32 %v316, %v317
    %v369 = vmax.f32 %v318, %v319
    %v370 = vmax.f32 %v320, %v321
    %v371 = vmax.f32 %v322, %v323
    %v372 = vmax.f32 %v324, %v325
    %v373 = vmax.f32 %v326, %v327
    %v374 = vmax.f32 %v328, %v329
    %v375 = vmax.f32 %v330, %v331
    %v376 = vmax.f32 %v332, %v333
    %v377 = vmax.f32 %v334, %v335
    %v378 = vmax.f32 %v336, %v337
    %v379 = vmax.f32 %v338, %v339
    %v380 = vmax.f32 %v340, %v341
    %v381 = vmax.f32 %v342, %v343
    %v382 = vmax.f32 %v344, %v345
    %v383 = vmax.f32 %v346, %v347
    %v384 = vmax.f32 %v348, %v349
    %v385 = vmax.f32 %v350, %v351
    %v386 = vmax.f32 %v352, %v353
    %v387 = vmax.f32 %v354, %v355
    %v388 = vmax.f32 %v356, 0.0
    %v389 = vmax.f32 %v357, %v293
    %v390 = vmax.f32 %v358, %v295
    %v391 = vmax.f32 %v359, %v297
    %v392 = vmax.f32 %v360, %v299
    %v393 = vmax.f32 %v361, %v301
    %v394 = vmax.f32 %v362, %v303
    %v395 = vmax.f32 %v363, %v305
    %v396 = vmax.f32 %v364, 0.0
    %v397 = vmax.f32 %v365, %v309
    %v398 = vmax.f32 %v366, %v311
    %v399 = vmax.f32 %v367, %v313
    %v400 = vmax.f32 %v368, %v315
    %v401 = vmax.f32 %v369, %v317
    %v402 = vmax.f32 %v370, %v319
    %v403 = vmax.f32 %v371, %v321
    %v404 = vmax.f32 %v372, 0.0
    %v405 = vmax.f32 %v373, %v325
    %v406 = vmax.f32 %v374, %v327
    %v407 = vmax.f32 %v375, %v329
    %v408 = vmax.f32 %v376, %v331
    %v409 = vmax.f32 %v377, %v333
    %v410 = vmax.f32 %v378, %v335
    %v411 = vmax.f32 %v379, %v337
    %v412 = vmax.f32 %v380, 0.0
    %v413 = vmax.f32 %v381, %v341
    %v414 = vmax.f32 %v382, %v343
    %v415 = vmax.f32 %v383, %v345
    %v416 = vmax.f32 %v384, %v347
    %v417 = vmax.f32 %v385, %v349
    %v418 = vmax.f32 %v386, %v351
    %v419 = vmax.f32 %v387, %v353
    %v436 = vrot.slane %v396, 7
    %v437 = vrot.slane %v397, 7
    %v438 = vrot.slane %v398, 7
    %v439 = vrot.slane %v399, 7
    %v440 = vrot.slane %v400, 7
    %v441 = vrot.slane %v401, 7
    %v442 = vrot.slane %v402, 7
    %v443 = vrot.slane %v403, 7
    %v444 = vrot.slane %v412, 7
    %v445 = vrot.slane %v413, 7
    %v446 = vrot.slane %v414, 7
    %v447 = vrot.slane %v415, 7
    %v448 = vrot.slane %v416, 7
    %v449 = vrot.slane %v417, 7
    %v450 = vrot.slane %v418, 7
    %v451 = vrot.slane %v419, 7
    %vm468 = vcmask 1040384
    %v469 = vsel %vm468, 0.0, %v436
    %v470 = vsel %vm468, 0.0, %v437
    %v471 = vsel %vm468, 0.0, %v438
    %v472 = vsel %vm468, 0.0, %v439
    %v473 = vsel %vm468, 0.0, %v440
    %v474 = vsel %vm468, 0.0, %v441
    %v475 = vsel %vm468, 0.0, %v442
    %v476 = vsel %vm468, 0.0, %v443
    %v477 = vsel %vm468, 0.0, %v444
    %v478 = vsel %vm468, 0.0, %v445
    %v479 = vsel %vm468, 0.0, %v446
    %v480 = vsel %vm468, 0.0, %v447
    %v481 = vsel %vm468, 0.0, %v448
    %v482 = vsel %vm468, 0.0, %v449
    %v483 = vsel %vm468, 0.0, %v450
    %v484 = vsel %vm468, 0.0, %v451
    %v485 = vmax.f32 %v388, %v396
    %v486 = vmax.f32 %v389, %v397
    %v487 = vmax.f32 %v390, %v398
    %v488 = vmax.f32 %v391, %v399
    %v489 = vmax.f32 %v392, %v400
    %v490 = vmax.f32 %v393, %v401
    %v491 = vmax.f32 %v394, %v402
    %v492 = vmax.f32 %v395, %v403
    %v493 = vmax.f32 %v404, %v412
    %v494 = vmax.f32 %v405, %v413
    %v495 = vmax.f32 %v406, %v414
    %v496 = vmax.f32 %v407, %v415
    %v497 = vmax.f32 %v408, %v416
    %v498 = vmax.f32 %v409, %v417
    %v499 = vmax.f32 %v410, %v418
    %v500 = vmax.f32 %v411, %v419
    %v501 = vmax.f32 %v485, %v469
    %v502 = vmax.f32 %v486, %v470
    %v503 = vmax.f32 %v487, %v471
    %v504 = vmax.f32 %v488, %v472
    %v505 = vmax.f32 %v489, %v473
    %v506 = vmax.f32 %v490, %v474
    %v507 = vmax.f32 %v491, %v475
    %v508 = vmax.f32 %v492, %v476
    %v509 = vmax.f32 %v493, %v477
    %v510 = vmax.f32 %v494, %v478
    %v511 = vmax.f32 %v495, %v479
    %v512 = vmax.f32 %v496, %v480
    %v513 = vmax.f32 %v497, %v481
    %v514 = vmax.f32 %v498, %v482
    %v515 = vmax.f32 %v499, %v483
    %v516 = vmax.f32 %v500, %v484
    %v517 = vadd.f32 %v501, %v502
    %v518 = vadd.f32 %v517, %v503
    %v519 = vadd.f32 %v518, %v504
    %v520 = vadd.f32 %v519, %v505
    %v521 = vadd.f32 %v520, %v506
    %v522 = vadd.f32 %v521, %v507
    %v523 = vadd.f32 %v522, %v508
    %v524 = vrot.slane %v523, 4
    %v525 = vadd.f32 %v523, %v524
    %v526 = vrot.slane %v525, 2
    %v527 = vadd.f32 %v525, %v526
    %v528 = vrot.slane %v527, 1
    %v529 = vadd.f32 %v527, %v528
    %v530 = vadd.f32 %v509, %v510
    %v531 = vadd.f32 %v530, %v511
    %v532 = vadd.f32 %v531, %v512
    %v533 = vadd.f32 %v532, %v513
    %v534 = vadd.f32 %v533, %v514
    %v535 = vadd.f32 %v534, %v515
    %v536 = vadd.f32 %v535, %v516
    %v537 = vrot.slane %v536, 4
    %v538 = vadd.f32 %v536, %v537
    %v539 = vrot.slane %v538, 2
    %v540 = vadd.f32 %v538, %v539
    %v541 = vrot.slane %v540, 1
    %v542 = vadd.f32 %v540, %v541
    %v543 = vmul.f32 %v529, 0.015625
    %v544 = vmul.f32 %v542, 0.015625
    %v545 = vpack.c.bf16 %v543, %v543
    %v546 = vpack.c.bf16 %v544, %v544
    %v547 = vld [vmem:[%s3] sm:$0xf]
    %v548 = vld [vmem:[%s3 + $0x4] sm:$0xf]
    %v549 = vld [vmem:[%s3 + $0x8] sm:$0xf]
    %v550 = vld [vmem:[%s3 + $0xc] sm:$0xf]
    %v551 = vld [vmem:[%s3 + $0x10] sm:$0xf]
    %v552 = vld [vmem:[%s3 + $0x14] sm:$0xf]
    %v553 = vld [vmem:[%s3 + $0x18] sm:$0xf]
    %v554 = vld [vmem:[%s3 + $0x1c] sm:$0xf]
    %v555 = vld [vmem:[%s3 + $0x20] sm:$0xf]
    %v556 = vld [vmem:[%s3 + $0x24] sm:$0xf]
    %v557 = vld [vmem:[%s3 + $0x28] sm:$0xf]
    %v558 = vld [vmem:[%s3 + $0x2c] sm:$0xf]
    %v559 = vld [vmem:[%s3 + $0x30] sm:$0xf]
    %v560 = vld [vmem:[%s3 + $0x34] sm:$0xf]
    %v561 = vld [vmem:[%s3 + $0x38] sm:$0xf]
    %v562 = vld [vmem:[%s3 + $0x3c] sm:$0xf]
    %v563 = vld [vmem:[%s4] sm:$0x1]
    %v565 = vlaneseq
    %v566 = vshrl.u32 %v565, 7
    %v567 = vsub.s32 0, %v566
    %v568 = vrot.slane %v563, %v567
    %v572 = vunpack.c.l.b16 %v545
    %v573 = vunpack.c.l.b16 %v546
    %vm574 = vcmask 1041409
    %v575 = vsel %vm574, %v573, %v572
    %v576 = vpack.c.b16 %v575, %v575
    %v594 = vunpack.c.l.b16 %v547
    %v595 = vunpack.c.l.b16 %v548
    %v596 = vunpack.c.l.b16 %v549
    %v597 = vunpack.c.l.b16 %v550
    %v598 = vunpack.c.l.b16 %v551
    %v599 = vunpack.c.l.b16 %v552
    %v600 = vunpack.c.l.b16 %v553
    %v601 = vunpack.c.l.b16 %v554
    %v602 = vunpack.c.l.b16 %v555
    %v603 = vunpack.c.l.b16 %v556
    %v604 = vunpack.c.l.b16 %v557
    %v605 = vunpack.c.l.b16 %v558
    %v606 = vunpack.c.l.b16 %v559
    %v607 = vunpack.c.l.b16 %v560
    %v608 = vunpack.c.l.b16 %v561
    %v609 = vunpack.c.l.b16 %v562
    %v610 = vpack.c.b16 %v595, %v594
    %v611 = vpack.c.b16 %v597, %v596
    %v612 = vpack.c.b16 %v599, %v598
    %v613 = vpack.c.b16 %v601, %v600
    %v614 = vpack.c.b16 %v603, %v602
    %v615 = vpack.c.b16 %v605, %v604
    %v616 = vpack.c.b16 %v607, %v606
    %v617 = vpack.c.b16 %v609, %v608
    %626 = vmatprep.subr.bf16.mxu0 0
    %627 = vmatpush1.bf16.msra.mxu0 %v617
    %628 = vmatprep.subr.bf16.mxu0 0
    %629 = vmatpush1.bf16.msra.mxu0 %v616
    %630 = vmatprep.subr.bf16.mxu0 0
    %631 = vmatpush1.bf16.msra.mxu0 %v615
    %632 = vmatprep.subr.bf16.mxu0 0
    %633 = vmatpush1.bf16.msra.mxu0 %v614
    %634 = vmatprep.subr.bf16.mxu0 0
    %635 = vmatpush1.bf16.msra.mxu0 %v613
    %636 = vmatprep.subr.bf16.mxu0 0
    %637 = vmatpush1.bf16.msra.mxu0 %v612
    %638 = vmatprep.subr.bf16.mxu0 0
    %639 = vmatpush1.bf16.msra.mxu0 %v611
    %640 = vmatprep.subr.bf16.mxu0 0
    %641 = vmatpush1.bf16.msra.mxu0 %v610
    %642 = vmatprep.subr.bf16.mxu0 0
    %643 = vmatpush2.bf16.msra.mxu0 0
    %644 = vmatprep.subr.bf16.mxu0 0
    %645 = vmatpush2.bf16.msra.mxu0 0
    %646 = vmatprep.subr.bf16.mxu0 0
    %647 = vmatpush2.bf16.msra.mxu0 0
    %648 = vmatprep.subr.bf16.mxu0 0
    %649 = vmatpush2.bf16.msra.mxu0 0
    %650 = vmatprep.subr.bf16.mxu0 0
    %651 = vmatpush2.bf16.msra.mxu0 0
    %652 = vmatprep.subr.bf16.mxu0 0
    %653 = vmatpush2.bf16.msra.mxu0 0
    %654 = vmatprep.subr.bf16.mxu0 0
    %655 = vmatpush2.bf16.msra.mxu0 0
    %656 = vmatprep.subr.bf16.mxu0 0
    %657 = vmatpush2.bf16.msra.mxu0 0
    %658 = vmatprep.mubr.bf16.mxu0 0
    %659 = vmatmul.mubr.bf16.gmra.mxu0 %v576
    %v660 = vpop.f32.mrf.mxu0
    %v661 = vadd.f32 %v568, %v660
    %v662 = vpop.f32.mrf.mxu0
    %v663 = vpop.f32.mrf.mxu0
    %v664 = vpop.f32.mrf.mxu0
    %665 = vdwg.mxu0
    %666 = vst [vmem:[#allocation2] sm:$0x3] %v661
    // Predicated region
    $region22: #{_lambda_.3} parent=1 // pred_check
      _
    $region23: #{_lambda_.3} parent=1 // pred_check_branch
      %668 = sbr.rel (0) target = $region25
    $region24: #{_lambda_.3} parent=1 // pred_region
      %s670 = ssub.s32 32, 32
      %671 = vsyncadd [#allocation3], %s670
      %s673 = sshll.u32 [#allocation2], 4
      %s674 = int_to_ptr.vmem [resolvable:$true] %s673
      %676 = dma.vmem_to_hbm [thread:$0]  %s674, 32, %s5, [#allocation3]
    $region25: #{_lambda_.3} parent=1 // pred_fallthru
      _
    // Predicated region
    $region26: #{_lambda_.3} parent=1 // pred_check
      _
    $region27: #{_lambda_.3} parent=1 // pred_check_branch
      %678 = sbr.rel (0) target = $region29
    $region28: #{_lambda_.3} parent=1 // pred_region
      %679 = dma.done [#allocation3], 32
    $region29: #{_lambda_.3} parent=1 // pred_fallthru
      _
    %680 = vsyncpa [#allocation3], 1

</llo_original>
